<compile_context>
chip_gen: v6e
topology: v6e:2x2x1
jax: 0.10.0
libtpu: 0.0.40
codegen_flags: <defaults>
</compile_context>

<pallas_src>
import jax
import jax.numpy as jnp
import numpy as np
from jax.experimental import pallas as pl
from jax.experimental.pallas import tpu as pltpu

HIDDEN = 64   # hidden_size (matches the PyTorch module)
VOCAB = 100   # output_size (small test vocab)
SEQ = 8       # decode steps folded into the single kernel call

LANE = 128
NEG_INF = -1e30


def _round_up(x, m):
    return (x + m - 1) // m * m


def decoder_rnn_kernel(tok_ref,      # (T, 1)   int32 token ids
                       emb_ref,      # (Vp, Hp) padded embedding table (VMEM-resident)
                       h0_ref,       # (1, Hp)  initial hidden
                       w_ih_ref,     # (Hp, 3*Hp) fused input-gate weights (r,z,n)
                       w_hh_ref,     # (Hp, 3*Hp) fused hidden-gate weights (r,z,n)
                       b_gi_ref,     # (1, 3*Hp)  folded biases: [bir+bhr, biz+bhz, bin]
                       b_hn_ref,     # (1, Hp)    b_hh_n (must stay inside r*(...))
                       w_out_ref,    # (Hp, Vp)
                       b_out_ref,    # (1, Vp)    padded vocab lanes = -1e30
                       logp_ref,     # out: (T, Vp) log-probs, one row per step
                       h_out_ref):   # out: (1, Hp) final hidden
    T, Vp = logp_ref.shape
    Hp = h0_ref.shape[-1]

    # --- embedding gather via one-hot MXU matmul (table stays resident) -------
    col_ids = jax.lax.broadcasted_iota(jnp.int32, (T, Vp), 1)
    onehot = (col_ids == tok_ref[...]).astype(jnp.float32)                  # (T, Vp)
    x = jnp.dot(onehot, emb_ref[...], preferred_element_type=jnp.float32)   # (T, Hp)
    x = jnp.maximum(x, 0.0)                                                 # ReLU

    # --- input-gate preactivations hoisted out of the recurrence (batched) ----
    gi = jnp.dot(x, w_ih_ref[...],
                 preferred_element_type=jnp.float32) + b_gi_ref[...]        # (T, 3*Hp)

    # --- sequential GRU recurrence, fully unrolled -----------------------------
    w_hh = w_hh_ref[...]
    b_hn = b_hn_ref[...]
    h = h0_ref[...]                                                         # (1, Hp)
    hs = []
    for t in range(T):
        gh = jnp.dot(h, w_hh, preferred_element_type=jnp.float32)           # (1, 3*Hp)
        gi_t = gi[t:t + 1, :]
        r = jax.nn.sigmoid(gi_t[:, :Hp] + gh[:, :Hp])
        z = jax.nn.sigmoid(gi_t[:, Hp:2 * Hp] + gh[:, Hp:2 * Hp])
        n = jnp.tanh(gi_t[:, 2 * Hp:] + r * (gh[:, 2 * Hp:] + b_hn))
        h = (1.0 - z) * n + z * h                                           # (1, Hp)
        hs.append(h)
    h_out_ref[...] = h
    h_all = jnp.concatenate(hs, axis=0)                                     # (T, Hp)

    # --- batched output projection + log-softmax, one dense (T, Vp) store ------
    logits = jnp.dot(h_all, w_out_ref[...],
                     preferred_element_type=jnp.float32) + b_out_ref[...]   # (T, Vp)
    m = jnp.max(logits, axis=-1, keepdims=True)
    lse = jnp.log(jnp.sum(jnp.exp(logits - m), axis=-1, keepdims=True)) + m
    logp_ref[...] = logits - lse


def _prepare_padded_params(params):
    """Fuse + pad PyTorch-convention params into the kernel layout."""
    emb, w_ih, w_hh, b_ih, b_hh, w_out, b_out = params
    V, H = emb.shape
    Hp = _round_up(H, LANE)
    Vp = _round_up(V, LANE)

    emb_p = jnp.pad(emb, ((0, Vp - V), (0, Hp - H)))                 # (Vp, Hp)

    def fuse_gate_weight(w):                                         # (3H, H) PyTorch layout
        blocks = []
        for g in range(3):
            wg_t = w[g * H:(g + 1) * H, :].T                         # (H, H), so x @ wg_t
            blocks.append(jnp.pad(wg_t, ((0, Hp - H), (0, Hp - H))))
        return jnp.concatenate(blocks, axis=1)                       # (Hp, 3*Hp)

    def pad_row(v):                                                  # (H,) -> (1, Hp)
        return jnp.pad(v.reshape(1, H), ((0, 0), (0, Hp - H)))

    w_ih_cat = fuse_gate_weight(w_ih)
    w_hh_cat = fuse_gate_weight(w_hh)

    b_ih_r, b_ih_z, b_ih_n = b_ih[:H], b_ih[H:2 * H], b_ih[2 * H:]
    b_hh_r, b_hh_z, b_hh_n = b_hh[:H], b_hh[H:2 * H], b_hh[2 * H:]
    # r/z biases fold into the batched input-gate preactivations; b_hh_n must
    # stay separate because gh_n gets scaled by r inside the tanh.
    b_gi_cat = jnp.concatenate([pad_row(b_ih_r + b_hh_r),
                                pad_row(b_ih_z + b_hh_z),
                                pad_row(b_ih_n)], axis=1)            # (1, 3*Hp)
    b_hn = pad_row(b_hh_n)                                           # (1, Hp)

    w_out_p = jnp.pad(w_out.T, ((0, Hp - H), (0, Vp - V)))           # (Hp, Vp)
    b_out_p = jnp.full((1, Vp), NEG_INF, jnp.float32).at[0, :V].set(b_out)

    return emb_p, w_ih_cat, w_hh_cat, b_gi_cat, b_hn, w_out_p, b_out_p, Hp, Vp


def decoder_rnn_decode(tokens, hidden, params):
    """Run SEQ teacher-forced decoder steps in a single pallas_call.

    Returns (logp[T, V], hidden[1, 1, H]); row t of logp equals the PyTorch
    module's output for (tokens[t], carried hidden).
    """
    emb = params[0]
    V, H = emb.shape
    (emb_p, w_ih_cat, w_hh_cat, b_gi_cat, b_hn,
     w_out_p, b_out_p, Hp, Vp) = _prepare_padded_params(params)

    T = int(tokens.shape[0])
    tok2d = jnp.asarray(tokens, jnp.int32).reshape(T, 1)
    h0 = jnp.pad(hidden.reshape(1, H).astype(jnp.float32), ((0, 0), (0, Hp - H)))

    logp_pad, h_pad = pl.pallas_call(
        decoder_rnn_kernel,
        out_shape=(jax.ShapeDtypeStruct((T, Vp), jnp.float32),
                   jax.ShapeDtypeStruct((1, Hp), jnp.float32)),
        grid=(1,),
        in_specs=[
            pl.BlockSpec((T, 1), lambda i: (0, 0)),          # token ids
            pl.BlockSpec((Vp, Hp), lambda i: (0, 0)),        # embedding table (resident)
            pl.BlockSpec((1, Hp), lambda i: (0, 0)),         # h0
            pl.BlockSpec((Hp, 3 * Hp), lambda i: (0, 0)),    # W_ih fused
            pl.BlockSpec((Hp, 3 * Hp), lambda i: (0, 0)),    # W_hh fused
            pl.BlockSpec((1, 3 * Hp), lambda i: (0, 0)),     # folded r/z/n input biases
            pl.BlockSpec((1, Hp), lambda i: (0, 0)),         # b_hh_n
            pl.BlockSpec((Hp, Vp), lambda i: (0, 0)),        # W_out
            pl.BlockSpec((1, Vp), lambda i: (0, 0)),         # b_out (pad = -1e30)
        ],
        out_specs=(
            pl.BlockSpec((T, Vp), lambda i: (0, 0)),
            pl.BlockSpec((1, Hp), lambda i: (0, 0)),
        ),
        compiler_params=pltpu.CompilerParams(
            dimension_semantics=("arbitrary",),
        ),
    )(tok2d, emb_p, h0, w_ih_cat, w_hh_cat, b_gi_cat, b_hn, w_out_p, b_out_p)

    # TODO(synk): with B>=2 independent decode streams, add a leading 'parallel'
    # batch grid axis so the second v7x TensorCore is used; B=1 here matches the
    # module's (input1, hidden) single-sequence semantics.
    return logp_pad[:, :V], h_pad[:, :H].reshape(1, 1, H)


def init_params(key, hidden_size, output_size):
    """Params in PyTorch-convention shapes/layout (gate order r, z, n)."""
    ks = jax.random.split(key, 7)
    s = 0.1
    emb = jax.random.normal(ks[0], (output_size, hidden_size), jnp.float32) * s
    w_ih = jax.random.normal(ks[1], (3 * hidden_size, hidden_size), jnp.float32) * s
    w_hh = jax.random.normal(ks[2], (3 * hidden_size, hidden_size), jnp.float32) * s
    b_ih = jax.random.normal(ks[3], (3 * hidden_size,), jnp.float32) * s
    b_hh = jax.random.normal(ks[4], (3 * hidden_size,), jnp.float32) * s
    w_out = jax.random.normal(ks[5], (output_size, hidden_size), jnp.float32) * s
    b_out = jax.random.normal(ks[6], (output_size,), jnp.float32) * s
    return emb, w_ih, w_hh, b_ih, b_hh, w_out, b_out


def reference_step(token, h, params):
    """Pure-JAX single-step forward mirroring the PyTorch module exactly."""
    emb, w_ih, w_hh, b_ih, b_hh, w_out, b_out = params
    H = emb.shape[1]
    x = jnp.maximum(emb[token].reshape(1, H), 0.0)
    gi = x @ w_ih.T + b_ih
    gh = h @ w_hh.T + b_hh
    gi_r, gi_z, gi_n = jnp.split(gi, 3, axis=1)
    gh_r, gh_z, gh_n = jnp.split(gh, 3, axis=1)
    r = jax.nn.sigmoid(gi_r + gh_r)
    z = jax.nn.sigmoid(gi_z + gh_z)
    n = jnp.tanh(gi_n + r * gh_n)
    h_new = (1.0 - z) * n + z * h
    logits = h_new @ w_out.T + b_out
    logp = logits - jax.scipy.special.logsumexp(logits, axis=1, keepdims=True)
    return logp, h_new


def reference_decode(tokens, hidden, params):
    H = params[0].shape[1]
    h = hidden.reshape(1, H)
    outs = []
    for t in range(tokens.shape[0]):
        logp, h = reference_step(tokens[t], h, params)
        outs.append(logp)
    return jnp.concatenate(outs, axis=0), h.reshape(1, 1, H)


if __name__ == "__main__":
    key = jax.random.PRNGKey(0)
    kp, kh, kt = jax.random.split(key, 3)

    params = init_params(kp, HIDDEN, VOCAB)
    tokens = jax.random.randint(kt, (SEQ,), 0, VOCAB, dtype=jnp.int32)
    hidden = jax.random.normal(kh, (1, 1, HIDDEN), jnp.float32)  # initHidden() would be zeros

    logp, h_new = decoder_rnn_decode(tokens, hidden, params)
    jax.block_until_ready((logp, h_new))

    ref_logp, ref_h = reference_decode(tokens, hidden, params)
    np.testing.assert_allclose(np.asarray(logp), np.asarray(ref_logp), atol=1e-4, rtol=1e-4)
    np.testing.assert_allclose(np.asarray(h_new), np.asarray(ref_h), atol=1e-4, rtol=1e-4)

    print("KERNEL_OK")
</pallas_src>

<mosaic_0001>
module attributes {stable_mosaic.version = 11 : i64} {
  func.func @decoder_rnn_kernel(%arg0: i32, %arg1: memref<8x1xi32, #tpu.memory_space<vmem>>, %arg2: memref<128x128xf32, #tpu.memory_space<vmem>>, %arg3: memref<1x128xf32, #tpu.memory_space<vmem>>, %arg4: memref<128x384xf32, #tpu.memory_space<vmem>>, %arg5: memref<128x384xf32, #tpu.memory_space<vmem>>, %arg6: memref<1x384xf32, #tpu.memory_space<vmem>>, %arg7: memref<1x128xf32, #tpu.memory_space<vmem>>, %arg8: memref<128x128xf32, #tpu.memory_space<vmem>>, %arg9: memref<1x128xf32, #tpu.memory_space<vmem>>, %arg10: memref<8x128xf32, #tpu.memory_space<vmem>>, %arg11: memref<1x128xf32, #tpu.memory_space<vmem>>) attributes {dimension_semantics = [#tpu.dimension_semantics<arbitrary>], iteration_bounds = array<i64: 1>, scalar_prefetch = 0 : i64, scratch_operands = 0 : i64, tpu.core_type = #tpu.core_type<tc>, window_params = [{pipeline_mode = #tpu.pipeline_mode<synchronous>, transform_indices = @transform_0, window_bounds = array<i64: 8, 1>}, {pipeline_mode = #tpu.pipeline_mode<synchronous>, transform_indices = @transform_1, window_bounds = array<i64: 128, 128>}, {pipeline_mode = #tpu.pipeline_mode<synchronous>, transform_indices = @transform_2, window_bounds = array<i64: 1, 128>}, {pipeline_mode = #tpu.pipeline_mode<synchronous>, transform_indices = @transform_3, window_bounds = array<i64: 128, 384>}, {pipeline_mode = #tpu.pipeline_mode<synchronous>, transform_indices = @transform_4, window_bounds = array<i64: 128, 384>}, {pipeline_mode = #tpu.pipeline_mode<synchronous>, transform_indices = @transform_5, window_bounds = array<i64: 1, 384>}, {pipeline_mode = #tpu.pipeline_mode<synchronous>, transform_indices = @transform_6, window_bounds = array<i64: 1, 128>}, {pipeline_mode = #tpu.pipeline_mode<synchronous>, transform_indices = @transform_7, window_bounds = array<i64: 128, 128>}, {pipeline_mode = #tpu.pipeline_mode<synchronous>, transform_indices = @transform_8, window_bounds = array<i64: 1, 128>}, {pipeline_mode = #tpu.pipeline_mode<synchronous>, transform_indices = @transform_9, window_bounds = array<i64: 8, 128>}, {pipeline_mode = #tpu.pipeline_mode<synchronous>, transform_indices = @transform_10, window_bounds = array<i64: 1, 128>}]} {
    %0 = tpu.iota {dimensions = array<i32: 1>} : vector<8x128xi32>
    %c0 = arith.constant 0 : index
    %c0_0 = arith.constant 0 : index
    %1 = vector.load %arg1[%c0, %c0_0] : memref<8x1xi32, #tpu.memory_space<vmem>>, vector<8x1xi32>
    %2 = vector.broadcast %1 : vector<8x1xi32> to vector<8x128xi32>
    %3 = arith.cmpi eq, %0, %2 : vector<8x128xi32>
    %4 = arith.extui %3 : vector<8x128xi1> to vector<8x128xi32>
    %5 = arith.sitofp %4 : vector<8x128xi32> to vector<8x128xf32>
    %c0_1 = arith.constant 0 : index
    %c0_2 = arith.constant 0 : index
    %6 = vector.load %arg2[%c0_1, %c0_2] : memref<128x128xf32, #tpu.memory_space<vmem>>, vector<128x128xf32>
    %cst = arith.constant dense<0.000000e+00> : vector<8x128xf32>
    %7 = tpu.matmul %5, %6, %cst {dimension_numbers = #tpu.dot_dimension_numbers<[1], [0], [0], [1], [0, 0, 1, 1], [], []>} : vector<8x128xf32>, vector<128x128xf32>, vector<8x128xf32> -> vector<8x128xf32>
    %cst_3 = arith.constant 0.000000e+00 : f32
    %8 = vector.broadcast %cst_3 : f32 to vector<8x128xf32>
    %9 = arith.maximumf %7, %8 : vector<8x128xf32>
    %c0_4 = arith.constant 0 : index
    %c0_5 = arith.constant 0 : index
    %10 = vector.load %arg4[%c0_4, %c0_5] : memref<128x384xf32, #tpu.memory_space<vmem>>, vector<128x384xf32>
    %cst_6 = arith.constant dense<0.000000e+00> : vector<8x384xf32>
    %11 = tpu.matmul %9, %10, %cst_6 {dimension_numbers = #tpu.dot_dimension_numbers<[1], [0], [0], [1], [0, 0, 1, 1], [], []>} : vector<8x128xf32>, vector<128x384xf32>, vector<8x384xf32> -> vector<8x384xf32>
    %c0_7 = arith.constant 0 : index
    %c0_8 = arith.constant 0 : index
    %12 = vector.load %arg6[%c0_7, %c0_8] : memref<1x384xf32, #tpu.memory_space<vmem>>, vector<1x384xf32>
    %13 = vector.broadcast %12 : vector<1x384xf32> to vector<8x384xf32>
    %14 = arith.addf %11, %13 : vector<8x384xf32>
    %c0_9 = arith.constant 0 : index
    %c0_10 = arith.constant 0 : index
    %15 = vector.load %arg5[%c0_9, %c0_10] : memref<128x384xf32, #tpu.memory_space<vmem>>, vector<128x384xf32>
    %c0_11 = arith.constant 0 : index
    %c0_12 = arith.constant 0 : index
    %16 = vector.load %arg7[%c0_11, %c0_12] : memref<1x128xf32, #tpu.memory_space<vmem>>, vector<1x128xf32>
    %c0_13 = arith.constant 0 : index
    %c0_14 = arith.constant 0 : index
    %17 = vector.load %arg3[%c0_13, %c0_14] : memref<1x128xf32, #tpu.memory_space<vmem>>, vector<1x128xf32>
    %cst_15 = arith.constant dense<0.000000e+00> : vector<1x384xf32>
    %18 = tpu.matmul %17, %15, %cst_15 {dimension_numbers = #tpu.dot_dimension_numbers<[1], [0], [0], [1], [0, 0, 1, 1], [], []>} : vector<1x128xf32>, vector<128x384xf32>, vector<1x384xf32> -> vector<1x384xf32>
    %19 = vector.extract_strided_slice %14 {offsets = [0, 0], sizes = [1, 384], strides = [1, 1]} : vector<8x384xf32> to vector<1x384xf32>
    %20 = vector.extract_strided_slice %19 {offsets = [0, 0], sizes = [1, 128], strides = [1, 1]} : vector<1x384xf32> to vector<1x128xf32>
    %21 = vector.extract_strided_slice %18 {offsets = [0, 0], sizes = [1, 128], strides = [1, 1]} : vector<1x384xf32> to vector<1x128xf32>
    %22 = arith.addf %20, %21 : vector<1x128xf32>
    %23 = arith.negf %22 : vector<1x128xf32>
    %24 = math.exp %23 : vector<1x128xf32>
    %cst_16 = arith.constant 1.000000e+00 : f32
    %25 = vector.broadcast %cst_16 : f32 to vector<1x128xf32>
    %26 = arith.addf %25, %24 : vector<1x128xf32>
    %27 = arith.divf %25, %26 : vector<1x128xf32>
    %28 = vector.extract_strided_slice %19 {offsets = [0, 128], sizes = [1, 128], strides = [1, 1]} : vector<1x384xf32> to vector<1x128xf32>
    %29 = vector.extract_strided_slice %18 {offsets = [0, 128], sizes = [1, 128], strides = [1, 1]} : vector<1x384xf32> to vector<1x128xf32>
    %30 = arith.addf %28, %29 : vector<1x128xf32>
    %31 = arith.negf %30 : vector<1x128xf32>
    %32 = math.exp %31 : vector<1x128xf32>
    %cst_17 = arith.constant 1.000000e+00 : f32
    %33 = vector.broadcast %cst_17 : f32 to vector<1x128xf32>
    %34 = arith.addf %33, %32 : vector<1x128xf32>
    %35 = arith.divf %33, %34 : vector<1x128xf32>
    %36 = vector.extract_strided_slice %19 {offsets = [0, 256], sizes = [1, 128], strides = [1, 1]} : vector<1x384xf32> to vector<1x128xf32>
    %37 = vector.extract_strided_slice %18 {offsets = [0, 256], sizes = [1, 128], strides = [1, 1]} : vector<1x384xf32> to vector<1x128xf32>
    %38 = arith.addf %37, %16 : vector<1x128xf32>
    %39 = arith.mulf %27, %38 : vector<1x128xf32>
    %40 = arith.addf %36, %39 : vector<1x128xf32>
    %41 = math.tanh %40 : vector<1x128xf32>
    %cst_18 = arith.constant 1.000000e+00 : f32
    %42 = vector.broadcast %cst_18 : f32 to vector<1x128xf32>
    %43 = arith.subf %42, %35 : vector<1x128xf32>
    %44 = arith.mulf %43, %41 : vector<1x128xf32>
    %45 = arith.mulf %35, %17 : vector<1x128xf32>
    %46 = arith.addf %44, %45 : vector<1x128xf32>
    %cst_19 = arith.constant dense<0.000000e+00> : vector<1x384xf32>
    %47 = tpu.matmul %46, %15, %cst_19 {dimension_numbers = #tpu.dot_dimension_numbers<[1], [0], [0], [1], [0, 0, 1, 1], [], []>} : vector<1x128xf32>, vector<128x384xf32>, vector<1x384xf32> -> vector<1x384xf32>
    %48 = vector.extract_strided_slice %14 {offsets = [1, 0], sizes = [1, 384], strides = [1, 1]} : vector<8x384xf32> to vector<1x384xf32>
    %49 = vector.extract_strided_slice %48 {offsets = [0, 0], sizes = [1, 128], strides = [1, 1]} : vector<1x384xf32> to vector<1x128xf32>
    %50 = vector.extract_strided_slice %47 {offsets = [0, 0], sizes = [1, 128], strides = [1, 1]} : vector<1x384xf32> to vector<1x128xf32>
    %51 = arith.addf %49, %50 : vector<1x128xf32>
    %52 = arith.negf %51 : vector<1x128xf32>
    %53 = math.exp %52 : vector<1x128xf32>
    %cst_20 = arith.constant 1.000000e+00 : f32
    %54 = vector.broadcast %cst_20 : f32 to vector<1x128xf32>
    %55 = arith.addf %54, %53 : vector<1x128xf32>
    %56 = arith.divf %54, %55 : vector<1x128xf32>
    %57 = vector.extract_strided_slice %48 {offsets = [0, 128], sizes = [1, 128], strides = [1, 1]} : vector<1x384xf32> to vector<1x128xf32>
    %58 = vector.extract_strided_slice %47 {offsets = [0, 128], sizes = [1, 128], strides = [1, 1]} : vector<1x384xf32> to vector<1x128xf32>
    %59 = arith.addf %57, %58 : vector<1x128xf32>
    %60 = arith.negf %59 : vector<1x128xf32>
    %61 = math.exp %60 : vector<1x128xf32>
    %cst_21 = arith.constant 1.000000e+00 : f32
    %62 = vector.broadcast %cst_21 : f32 to vector<1x128xf32>
    %63 = arith.addf %62, %61 : vector<1x128xf32>
    %64 = arith.divf %62, %63 : vector<1x128xf32>
    %65 = vector.extract_strided_slice %48 {offsets = [0, 256], sizes = [1, 128], strides = [1, 1]} : vector<1x384xf32> to vector<1x128xf32>
    %66 = vector.extract_strided_slice %47 {offsets = [0, 256], sizes = [1, 128], strides = [1, 1]} : vector<1x384xf32> to vector<1x128xf32>
    %67 = arith.addf %66, %16 : vector<1x128xf32>
    %68 = arith.mulf %56, %67 : vector<1x128xf32>
    %69 = arith.addf %65, %68 : vector<1x128xf32>
    %70 = math.tanh %69 : vector<1x128xf32>
    %cst_22 = arith.constant 1.000000e+00 : f32
    %71 = vector.broadcast %cst_22 : f32 to vector<1x128xf32>
    %72 = arith.subf %71, %64 : vector<1x128xf32>
    %73 = arith.mulf %72, %70 : vector<1x128xf32>
    %74 = arith.mulf %64, %46 : vector<1x128xf32>
    %75 = arith.addf %73, %74 : vector<1x128xf32>
    %cst_23 = arith.constant dense<0.000000e+00> : vector<1x384xf32>
    %76 = tpu.matmul %75, %15, %cst_23 {dimension_numbers = #tpu.dot_dimension_numbers<[1], [0], [0], [1], [0, 0, 1, 1], [], []>} : vector<1x128xf32>, vector<128x384xf32>, vector<1x384xf32> -> vector<1x384xf32>
    %77 = vector.extract_strided_slice %14 {offsets = [2, 0], sizes = [1, 384], strides = [1, 1]} : vector<8x384xf32> to vector<1x384xf32>
    %78 = vector.extract_strided_slice %77 {offsets = [0, 0], sizes = [1, 128], strides = [1, 1]} : vector<1x384xf32> to vector<1x128xf32>
    %79 = vector.extract_strided_slice %76 {offsets = [0, 0], sizes = [1, 128], strides = [1, 1]} : vector<1x384xf32> to vector<1x128xf32>
    %80 = arith.addf %78, %79 : vector<1x128xf32>
    %81 = arith.negf %80 : vector<1x128xf32>
    %82 = math.exp %81 : vector<1x128xf32>
    %cst_24 = arith.constant 1.000000e+00 : f32
    %83 = vector.broadcast %cst_24 : f32 to vector<1x128xf32>
    %84 = arith.addf %83, %82 : vector<1x128xf32>
    %85 = arith.divf %83, %84 : vector<1x128xf32>
    %86 = vector.extract_strided_slice %77 {offsets = [0, 128], sizes = [1, 128], strides = [1, 1]} : vector<1x384xf32> to vector<1x128xf32>
    %87 = vector.extract_strided_slice %76 {offsets = [0, 128], sizes = [1, 128], strides = [1, 1]} : vector<1x384xf32> to vector<1x128xf32>
    %88 = arith.addf %86, %87 : vector<1x128xf32>
    %89 = arith.negf %88 : vector<1x128xf32>
    %90 = math.exp %89 : vector<1x128xf32>
    %cst_25 = arith.constant 1.000000e+00 : f32
    %91 = vector.broadcast %cst_25 : f32 to vector<1x128xf32>
    %92 = arith.addf %91, %90 : vector<1x128xf32>
    %93 = arith.divf %91, %92 : vector<1x128xf32>
    %94 = vector.extract_strided_slice %77 {offsets = [0, 256], sizes = [1, 128], strides = [1, 1]} : vector<1x384xf32> to vector<1x128xf32>
    %95 = vector.extract_strided_slice %76 {offsets = [0, 256], sizes = [1, 128], strides = [1, 1]} : vector<1x384xf32> to vector<1x128xf32>
    %96 = arith.addf %95, %16 : vector<1x128xf32>
    %97 = arith.mulf %85, %96 : vector<1x128xf32>
    %98 = arith.addf %94, %97 : vector<1x128xf32>
    %99 = math.tanh %98 : vector<1x128xf32>
    %cst_26 = arith.constant 1.000000e+00 : f32
    %100 = vector.broadcast %cst_26 : f32 to vector<1x128xf32>
    %101 = arith.subf %100, %93 : vector<1x128xf32>
    %102 = arith.mulf %101, %99 : vector<1x128xf32>
    %103 = arith.mulf %93, %75 : vector<1x128xf32>
    %104 = arith.addf %102, %103 : vector<1x128xf32>
    %cst_27 = arith.constant dense<0.000000e+00> : vector<1x384xf32>
    %105 = tpu.matmul %104, %15, %cst_27 {dimension_numbers = #tpu.dot_dimension_numbers<[1], [0], [0], [1], [0, 0, 1, 1], [], []>} : vector<1x128xf32>, vector<128x384xf32>, vector<1x384xf32> -> vector<1x384xf32>
    %106 = vector.extract_strided_slice %14 {offsets = [3, 0], sizes = [1, 384], strides = [1, 1]} : vector<8x384xf32> to vector<1x384xf32>
    %107 = vector.extract_strided_slice %106 {offsets = [0, 0], sizes = [1, 128], strides = [1, 1]} : vector<1x384xf32> to vector<1x128xf32>
    %108 = vector.extract_strided_slice %105 {offsets = [0, 0], sizes = [1, 128], strides = [1, 1]} : vector<1x384xf32> to vector<1x128xf32>
    %109 = arith.addf %107, %108 : vector<1x128xf32>
    %110 = arith.negf %109 : vector<1x128xf32>
    %111 = math.exp %110 : vector<1x128xf32>
    %cst_28 = arith.constant 1.000000e+00 : f32
    %112 = vector.broadcast %cst_28 : f32 to vector<1x128xf32>
    %113 = arith.addf %112, %111 : vector<1x128xf32>
    %114 = arith.divf %112, %113 : vector<1x128xf32>
    %115 = vector.extract_strided_slice %106 {offsets = [0, 128], sizes = [1, 128], strides = [1, 1]} : vector<1x384xf32> to vector<1x128xf32>
    %116 = vector.extract_strided_slice %105 {offsets = [0, 128], sizes = [1, 128], strides = [1, 1]} : vector<1x384xf32> to vector<1x128xf32>
    %117 = arith.addf %115, %116 : vector<1x128xf32>
    %118 = arith.negf %117 : vector<1x128xf32>
    %119 = math.exp %118 : vector<1x128xf32>
    %cst_29 = arith.constant 1.000000e+00 : f32
    %120 = vector.broadcast %cst_29 : f32 to vector<1x128xf32>
    %121 = arith.addf %120, %119 : vector<1x128xf32>
    %122 = arith.divf %120, %121 : vector<1x128xf32>
    %123 = vector.extract_strided_slice %106 {offsets = [0, 256], sizes = [1, 128], strides = [1, 1]} : vector<1x384xf32> to vector<1x128xf32>
    %124 = vector.extract_strided_slice %105 {offsets = [0, 256], sizes = [1, 128], strides = [1, 1]} : vector<1x384xf32> to vector<1x128xf32>
    %125 = arith.addf %124, %16 : vector<1x128xf32>
    %126 = arith.mulf %114, %125 : vector<1x128xf32>
    %127 = arith.addf %123, %126 : vector<1x128xf32>
    %128 = math.tanh %127 : vector<1x128xf32>
    %cst_30 = arith.constant 1.000000e+00 : f32
    %129 = vector.broadcast %cst_30 : f32 to vector<1x128xf32>
    %130 = arith.subf %129, %122 : vector<1x128xf32>
    %131 = arith.mulf %130, %128 : vector<1x128xf32>
    %132 = arith.mulf %122, %104 : vector<1x128xf32>
    %133 = arith.addf %131, %132 : vector<1x128xf32>
    %cst_31 = arith.constant dense<0.000000e+00> : vector<1x384xf32>
    %134 = tpu.matmul %133, %15, %cst_31 {dimension_numbers = #tpu.dot_dimension_numbers<[1], [0], [0], [1], [0, 0, 1, 1], [], []>} : vector<1x128xf32>, vector<128x384xf32>, vector<1x384xf32> -> vector<1x384xf32>
    %135 = vector.extract_strided_slice %14 {offsets = [4, 0], sizes = [1, 384], strides = [1, 1]} : vector<8x384xf32> to vector<1x384xf32>
    %136 = vector.extract_strided_slice %135 {offsets = [0, 0], sizes = [1, 128], strides = [1, 1]} : vector<1x384xf32> to vector<1x128xf32>
    %137 = vector.extract_strided_slice %134 {offsets = [0, 0], sizes = [1, 128], strides = [1, 1]} : vector<1x384xf32> to vector<1x128xf32>
    %138 = arith.addf %136, %137 : vector<1x128xf32>
    %139 = arith.negf %138 : vector<1x128xf32>
    %140 = math.exp %139 : vector<1x128xf32>
    %cst_32 = arith.constant 1.000000e+00 : f32
    %141 = vector.broadcast %cst_32 : f32 to vector<1x128xf32>
    %142 = arith.addf %141, %140 : vector<1x128xf32>
    %143 = arith.divf %141, %142 : vector<1x128xf32>
    %144 = vector.extract_strided_slice %135 {offsets = [0, 128], sizes = [1, 128], strides = [1, 1]} : vector<1x384xf32> to vector<1x128xf32>
    %145 = vector.extract_strided_slice %134 {offsets = [0, 128], sizes = [1, 128], strides = [1, 1]} : vector<1x384xf32> to vector<1x128xf32>
    %146 = arith.addf %144, %145 : vector<1x128xf32>
    %147 = arith.negf %146 : vector<1x128xf32>
    %148 = math.exp %147 : vector<1x128xf32>
    %cst_33 = arith.constant 1.000000e+00 : f32
    %149 = vector.broadcast %cst_33 : f32 to vector<1x128xf32>
    %150 = arith.addf %149, %148 : vector<1x128xf32>
    %151 = arith.divf %149, %150 : vector<1x128xf32>
    %152 = vector.extract_strided_slice %135 {offsets = [0, 256], sizes = [1, 128], strides = [1, 1]} : vector<1x384xf32> to vector<1x128xf32>
    %153 = vector.extract_strided_slice %134 {offsets = [0, 256], sizes = [1, 128], strides = [1, 1]} : vector<1x384xf32> to vector<1x128xf32>
    %154 = arith.addf %153, %16 : vector<1x128xf32>
    %155 = arith.mulf %143, %154 : vector<1x128xf32>
    %156 = arith.addf %152, %155 : vector<1x128xf32>
    %157 = math.tanh %156 : vector<1x128xf32>
    %cst_34 = arith.constant 1.000000e+00 : f32
    %158 = vector.broadcast %cst_34 : f32 to vector<1x128xf32>
    %159 = arith.subf %158, %151 : vector<1x128xf32>
    %160 = arith.mulf %159, %157 : vector<1x128xf32>
    %161 = arith.mulf %151, %133 : vector<1x128xf32>
    %162 = arith.addf %160, %161 : vector<1x128xf32>
    %cst_35 = arith.constant dense<0.000000e+00> : vector<1x384xf32>
    %163 = tpu.matmul %162, %15, %cst_35 {dimension_numbers = #tpu.dot_dimension_numbers<[1], [0], [0], [1], [0, 0, 1, 1], [], []>} : vector<1x128xf32>, vector<128x384xf32>, vector<1x384xf32> -> vector<1x384xf32>
    %164 = vector.extract_strided_slice %14 {offsets = [5, 0], sizes = [1, 384], strides = [1, 1]} : vector<8x384xf32> to vector<1x384xf32>
    %165 = vector.extract_strided_slice %164 {offsets = [0, 0], sizes = [1, 128], strides = [1, 1]} : vector<1x384xf32> to vector<1x128xf32>
    %166 = vector.extract_strided_slice %163 {offsets = [0, 0], sizes = [1, 128], strides = [1, 1]} : vector<1x384xf32> to vector<1x128xf32>
    %167 = arith.addf %165, %166 : vector<1x128xf32>
    %168 = arith.negf %167 : vector<1x128xf32>
    %169 = math.exp %168 : vector<1x128xf32>
    %cst_36 = arith.constant 1.000000e+00 : f32
    %170 = vector.broadcast %cst_36 : f32 to vector<1x128xf32>
    %171 = arith.addf %170, %169 : vector<1x128xf32>
    %172 = arith.divf %170, %171 : vector<1x128xf32>
    %173 = vector.extract_strided_slice %164 {offsets = [0, 128], sizes = [1, 128], strides = [1, 1]} : vector<1x384xf32> to vector<1x128xf32>
    %174 = vector.extract_strided_slice %163 {offsets = [0, 128], sizes = [1, 128], strides = [1, 1]} : vector<1x384xf32> to vector<1x128xf32>
    %175 = arith.addf %173, %174 : vector<1x128xf32>
    %176 = arith.negf %175 : vector<1x128xf32>
    %177 = math.exp %176 : vector<1x128xf32>
    %cst_37 = arith.constant 1.000000e+00 : f32
    %178 = vector.broadcast %cst_37 : f32 to vector<1x128xf32>
    %179 = arith.addf %178, %177 : vector<1x128xf32>
    %180 = arith.divf %178, %179 : vector<1x128xf32>
    %181 = vector.extract_strided_slice %164 {offsets = [0, 256], sizes = [1, 128], strides = [1, 1]} : vector<1x384xf32> to vector<1x128xf32>
    %182 = vector.extract_strided_slice %163 {offsets = [0, 256], sizes = [1, 128], strides = [1, 1]} : vector<1x384xf32> to vector<1x128xf32>
    %183 = arith.addf %182, %16 : vector<1x128xf32>
    %184 = arith.mulf %172, %183 : vector<1x128xf32>
    %185 = arith.addf %181, %184 : vector<1x128xf32>
    %186 = math.tanh %185 : vector<1x128xf32>
    %cst_38 = arith.constant 1.000000e+00 : f32
    %187 = vector.broadcast %cst_38 : f32 to vector<1x128xf32>
    %188 = arith.subf %187, %180 : vector<1x128xf32>
    %189 = arith.mulf %188, %186 : vector<1x128xf32>
    %190 = arith.mulf %180, %162 : vector<1x128xf32>
    %191 = arith.addf %189, %190 : vector<1x128xf32>
    %cst_39 = arith.constant dense<0.000000e+00> : vector<1x384xf32>
    %192 = tpu.matmul %191, %15, %cst_39 {dimension_numbers = #tpu.dot_dimension_numbers<[1], [0], [0], [1], [0, 0, 1, 1], [], []>} : vector<1x128xf32>, vector<128x384xf32>, vector<1x384xf32> -> vector<1x384xf32>
    %193 = vector.extract_strided_slice %14 {offsets = [6, 0], sizes = [1, 384], strides = [1, 1]} : vector<8x384xf32> to vector<1x384xf32>
    %194 = vector.extract_strided_slice %193 {offsets = [0, 0], sizes = [1, 128], strides = [1, 1]} : vector<1x384xf32> to vector<1x128xf32>
    %195 = vector.extract_strided_slice %192 {offsets = [0, 0], sizes = [1, 128], strides = [1, 1]} : vector<1x384xf32> to vector<1x128xf32>
    %196 = arith.addf %194, %195 : vector<1x128xf32>
    %197 = arith.negf %196 : vector<1x128xf32>
    %198 = math.exp %197 : vector<1x128xf32>
    %cst_40 = arith.constant 1.000000e+00 : f32
    %199 = vector.broadcast %cst_40 : f32 to vector<1x128xf32>
    %200 = arith.addf %199, %198 : vector<1x128xf32>
    %201 = arith.divf %199, %200 : vector<1x128xf32>
    %202 = vector.extract_strided_slice %193 {offsets = [0, 128], sizes = [1, 128], strides = [1, 1]} : vector<1x384xf32> to vector<1x128xf32>
    %203 = vector.extract_strided_slice %192 {offsets = [0, 128], sizes = [1, 128], strides = [1, 1]} : vector<1x384xf32> to vector<1x128xf32>
    %204 = arith.addf %202, %203 : vector<1x128xf32>
    %205 = arith.negf %204 : vector<1x128xf32>
    %206 = math.exp %205 : vector<1x128xf32>
    %cst_41 = arith.constant 1.000000e+00 : f32
    %207 = vector.broadcast %cst_41 : f32 to vector<1x128xf32>
    %208 = arith.addf %207, %206 : vector<1x128xf32>
    %209 = arith.divf %207, %208 : vector<1x128xf32>
    %210 = vector.extract_strided_slice %193 {offsets = [0, 256], sizes = [1, 128], strides = [1, 1]} : vector<1x384xf32> to vector<1x128xf32>
    %211 = vector.extract_strided_slice %192 {offsets = [0, 256], sizes = [1, 128], strides = [1, 1]} : vector<1x384xf32> to vector<1x128xf32>
    %212 = arith.addf %211, %16 : vector<1x128xf32>
    %213 = arith.mulf %201, %212 : vector<1x128xf32>
    %214 = arith.addf %210, %213 : vector<1x128xf32>
    %215 = math.tanh %214 : vector<1x128xf32>
    %cst_42 = arith.constant 1.000000e+00 : f32
    %216 = vector.broadcast %cst_42 : f32 to vector<1x128xf32>
    %217 = arith.subf %216, %209 : vector<1x128xf32>
    %218 = arith.mulf %217, %215 : vector<1x128xf32>
    %219 = arith.mulf %209, %191 : vector<1x128xf32>
    %220 = arith.addf %218, %219 : vector<1x128xf32>
    %cst_43 = arith.constant dense<0.000000e+00> : vector<1x384xf32>
    %221 = tpu.matmul %220, %15, %cst_43 {dimension_numbers = #tpu.dot_dimension_numbers<[1], [0], [0], [1], [0, 0, 1, 1], [], []>} : vector<1x128xf32>, vector<128x384xf32>, vector<1x384xf32> -> vector<1x384xf32>
    %222 = vector.extract_strided_slice %14 {offsets = [7, 0], sizes = [1, 384], strides = [1, 1]} : vector<8x384xf32> to vector<1x384xf32>
    %223 = vector.extract_strided_slice %222 {offsets = [0, 0], sizes = [1, 128], strides = [1, 1]} : vector<1x384xf32> to vector<1x128xf32>
    %224 = vector.extract_strided_slice %221 {offsets = [0, 0], sizes = [1, 128], strides = [1, 1]} : vector<1x384xf32> to vector<1x128xf32>
    %225 = arith.addf %223, %224 : vector<1x128xf32>
    %226 = arith.negf %225 : vector<1x128xf32>
    %227 = math.exp %226 : vector<1x128xf32>
    %cst_44 = arith.constant 1.000000e+00 : f32
    %228 = vector.broadcast %cst_44 : f32 to vector<1x128xf32>
    %229 = arith.addf %228, %227 : vector<1x128xf32>
    %230 = arith.divf %228, %229 : vector<1x128xf32>
    %231 = vector.extract_strided_slice %222 {offsets = [0, 128], sizes = [1, 128], strides = [1, 1]} : vector<1x384xf32> to vector<1x128xf32>
    %232 = vector.extract_strided_slice %221 {offsets = [0, 128], sizes = [1, 128], strides = [1, 1]} : vector<1x384xf32> to vector<1x128xf32>
    %233 = arith.addf %231, %232 : vector<1x128xf32>
    %234 = arith.negf %233 : vector<1x128xf32>
    %235 = math.exp %234 : vector<1x128xf32>
    %cst_45 = arith.constant 1.000000e+00 : f32
    %236 = vector.broadcast %cst_45 : f32 to vector<1x128xf32>
    %237 = arith.addf %236, %235 : vector<1x128xf32>
    %238 = arith.divf %236, %237 : vector<1x128xf32>
    %239 = vector.extract_strided_slice %222 {offsets = [0, 256], sizes = [1, 128], strides = [1, 1]} : vector<1x384xf32> to vector<1x128xf32>
    %240 = vector.extract_strided_slice %221 {offsets = [0, 256], sizes = [1, 128], strides = [1, 1]} : vector<1x384xf32> to vector<1x128xf32>
    %241 = arith.addf %240, %16 : vector<1x128xf32>
    %242 = arith.mulf %230, %241 : vector<1x128xf32>
    %243 = arith.addf %239, %242 : vector<1x128xf32>
    %244 = math.tanh %243 : vector<1x128xf32>
    %cst_46 = arith.constant 1.000000e+00 : f32
    %245 = vector.broadcast %cst_46 : f32 to vector<1x128xf32>
    %246 = arith.subf %245, %238 : vector<1x128xf32>
    %247 = arith.mulf %246, %244 : vector<1x128xf32>
    %248 = arith.mulf %238, %220 : vector<1x128xf32>
    %249 = arith.addf %247, %248 : vector<1x128xf32>
    %c0_47 = arith.constant 0 : index
    %c0_48 = arith.constant 0 : index
    %250 = vector.load %arg11[%c0_47, %c0_48] : memref<1x128xf32, #tpu.memory_space<vmem>>, vector<1x128xf32>
    tpu.vector_store %arg11[%c0_47, %c0_48], %249 {strides = array<i32>} : memref<1x128xf32, #tpu.memory_space<vmem>>, vector<1x128xf32>,
    %251 = tpu.concatenate %46, %75, %104, %133, %162, %191, %220, %249 in 0 : vector<1x128xf32>, vector<1x128xf32>, vector<1x128xf32>, vector<1x128xf32>, vector<1x128xf32>, vector<1x128xf32>, vector<1x128xf32>, vector<1x128xf32> -> vector<8x128xf32>
    %c0_49 = arith.constant 0 : index
    %c0_50 = arith.constant 0 : index
    %252 = vector.load %arg8[%c0_49, %c0_50] : memref<128x128xf32, #tpu.memory_space<vmem>>, vector<128x128xf32>
    %cst_51 = arith.constant dense<0.000000e+00> : vector<8x128xf32>
    %253 = tpu.matmul %251, %252, %cst_51 {dimension_numbers = #tpu.dot_dimension_numbers<[1], [0], [0], [1], [0, 0, 1, 1], [], []>} : vector<8x128xf32>, vector<128x128xf32>, vector<8x128xf32> -> vector<8x128xf32>
    %c0_52 = arith.constant 0 : index
    %c0_53 = arith.constant 0 : index
    %254 = vector.load %arg9[%c0_52, %c0_53] : memref<1x128xf32, #tpu.memory_space<vmem>>, vector<1x128xf32>
    %255 = vector.broadcast %254 : vector<1x128xf32> to vector<8x128xf32>
    %256 = arith.addf %253, %255 : vector<8x128xf32>
    %cst_54 = arith.constant dense<0xFF800000> : vector<8xf32>
    %257 = vector.multi_reduction <maximumf>, %256, %cst_54 [1] : vector<8x128xf32> to vector<8xf32>
    %258 = vector.shape_cast %257 : vector<8xf32> to vector<8x1xf32>
    %259 = vector.broadcast %258 : vector<8x1xf32> to vector<8x128xf32>
    %260 = arith.subf %256, %259 : vector<8x128xf32>
    %261 = math.exp %260 : vector<8x128xf32>
    %cst_55 = arith.constant dense<0.000000e+00> : vector<8xf32>
    %262 = vector.multi_reduction <add>, %261, %cst_55 [1] : vector<8x128xf32> to vector<8xf32>
    %263 = vector.shape_cast %262 : vector<8xf32> to vector<8x1xf32>
    %264 = math.log %263 : vector<8x1xf32>
    %265 = arith.addf %264, %258 : vector<8x1xf32>
    %266 = vector.broadcast %265 : vector<8x1xf32> to vector<8x128xf32>
    %267 = arith.subf %256, %266 : vector<8x128xf32>
    %c0_56 = arith.constant 0 : index
    %c0_57 = arith.constant 0 : index
    %268 = vector.load %arg10[%c0_56, %c0_57] : memref<8x128xf32, #tpu.memory_space<vmem>>, vector<8x128xf32>
    tpu.vector_store %arg10[%c0_56, %c0_57], %267 {strides = array<i32>} : memref<8x128xf32, #tpu.memory_space<vmem>>, vector<8x128xf32>,
    return
  }
  func.func @transform_0(%arg0: i32) -> (i32, i32) {
    %c0_i32 = arith.constant 0 : i32
    %c0_i32_0 = arith.constant 0 : i32
    %c0_i32_1 = arith.constant 0 : i32
    return %c0_i32, %c0_i32_0 : i32, i32
  }
  func.func @transform_1(%arg0: i32) -> (i32, i32) {
    %c0_i32 = arith.constant 0 : i32
    %c0_i32_0 = arith.constant 0 : i32
    %c0_i32_1 = arith.constant 0 : i32
    return %c0_i32, %c0_i32_0 : i32, i32
  }
  func.func @transform_2(%arg0: i32) -> (i32, i32) {
    %c0_i32 = arith.constant 0 : i32
    %c0_i32_0 = arith.constant 0 : i32
    %c0_i32_1 = arith.constant 0 : i32
    return %c0_i32, %c0_i32_0 : i32, i32
  }
  func.func @transform_3(%arg0: i32) -> (i32, i32) {
    %c0_i32 = arith.constant 0 : i32
    %c0_i32_0 = arith.constant 0 : i32
    %c0_i32_1 = arith.constant 0 : i32
    return %c0_i32, %c0_i32_0 : i32, i32
  }
  func.func @transform_4(%arg0: i32) -> (i32, i32) {
    %c0_i32 = arith.constant 0 : i32
    %c0_i32_0 = arith.constant 0 : i32
    %c0_i32_1 = arith.constant 0 : i32
    return %c0_i32, %c0_i32_0 : i32, i32
  }
  func.func @transform_5(%arg0: i32) -> (i32, i32) {
    %c0_i32 = arith.constant 0 : i32
    %c0_i32_0 = arith.constant 0 : i32
    %c0_i32_1 = arith.constant 0 : i32
    return %c0_i32, %c0_i32_0 : i32, i32
  }
  func.func @transform_6(%arg0: i32) -> (i32, i32) {
    %c0_i32 = arith.constant 0 : i32
    %c0_i32_0 = arith.constant 0 : i32
    %c0_i32_1 = arith.constant 0 : i32
    return %c0_i32, %c0_i32_0 : i32, i32
  }
  func.func @transform_7(%arg0: i32) -> (i32, i32) {
    %c0_i32 = arith.constant 0 : i32
    %c0_i32_0 = arith.constant 0 : i32
    %c0_i32_1 = arith.constant 0 : i32
    return %c0_i32, %c0_i32_0 : i32, i32
  }
  func.func @transform_8(%arg0: i32) -> (i32, i32) {
    %c0_i32 = arith.constant 0 : i32
    %c0_i32_0 = arith.constant 0 : i32
    %c0_i32_1 = arith.constant 0 : i32
    return %c0_i32, %c0_i32_0 : i32, i32
  }
  func.func @transform_9(%arg0: i32) -> (i32, i32) {
    %c0_i32 = arith.constant 0 : i32
    %c0_i32_0 = arith.constant 0 : i32
    %c0_i32_1 = arith.constant 0 : i32
    return %c0_i32, %c0_i32_0 : i32, i32
  }
  func.func @transform_10(%arg0: i32) -> (i32, i32) {
    %c0_i32 = arith.constant 0 : i32
    %c0_i32_0 = arith.constant 0 : i32
    %c0_i32_1 = arith.constant 0 : i32
    return %c0_i32, %c0_i32_0 : i32, i32
  }
}

</mosaic_0001>

<llo_original>
// kernel: tpu_custom_call.1
$region0: #{tpu_custom_call.1}
  #allocation0 [shape = 'u32[]', space=smem, size = 0x4, offset = 0x4, fixed_abs, tag = 'smem constant byte address 0x4 - core index']
  #allocation1 [shape = 'u32[144,128]{1,0:T(1,128)}', space=vmem, size = 0x12000, scoped, tag = 'internal scratch']
  %s0 = inlined_call_operand.vmem [shape: s32[8,1], index: 0, kind: input, shape index: {}]
  %s1 = inlined_call_operand.hbm [shape: f32[128,128], index: 1, kind: input, shape index: {}]
  %s2 = inlined_call_operand.vmem [shape: f32[1,128], index: 2, kind: input, shape index: {}]
  %s3 = inlined_call_operand.hbm [shape: f32[128,384], index: 3, kind: input, shape index: {}]
  %s4 = inlined_call_operand.hbm [shape: f32[128,384], index: 4, kind: input, shape index: {}]
  %s5 = inlined_call_operand.vmem [shape: f32[1,384], index: 5, kind: input, shape index: {}]
  %s6 = inlined_call_operand.vmem [shape: f32[1,128], index: 6, kind: input, shape index: {}]
  %s7 = inlined_call_operand.hbm [shape: f32[128,128], index: 7, kind: input, shape index: {}]
  %s8 = inlined_call_operand.vmem [shape: f32[1,128], index: 8, kind: input, shape index: {}]
  %s9 = inlined_call_operand.hbm [shape: f32[8,128], index: 9, kind: output, shape index: {0}]
  %s10 = inlined_call_operand.hbm [shape: f32[1,128], index: 10, kind: output, shape index: {1}]
  %11 = xla_tuple %s9, %s10
  %s12 = sld [smem:[#allocation0]]
  $region70: #{tpu_custom_call.1} parent=0
    _
  %s14 = ssub.s32 1, %s12
  %s15 = scalar_select 0, %s14, %s12
  $region1: #{tpu_custom_call.1} parent=0
    #allocation2 [shape = 'u8[65536]{0}', space=vmem, size = 0x10000, scoped, tag = 'input window, operand 1, single buffered']
    #allocation3 [shape = 's32[1]{0}', space=sflag, size = 0x4, scoped, tag = 'scoped memory for tpu_custom_call.1']
    #allocation4 [shape = 's32[1]{0}', space=sflag, size = 0x4, scoped, tag = 'scoped memory for tpu_custom_call.1']
    #allocation5 [shape = 'u8[196608]{0}', space=vmem, size = 0x30000, scoped, tag = 'input window, operand 3, single buffered']
    #allocation6 [shape = 's32[1]{0}', space=sflag, size = 0x4, scoped, tag = 'scoped memory for tpu_custom_call.1']
    #allocation7 [shape = 'u8[196608]{0}', space=vmem, size = 0x30000, scoped, tag = 'input window, operand 4, single buffered']
    #allocation8 [shape = 'u8[65536]{0}', space=vmem, size = 0x10000, scoped, tag = 'input window, operand 7, single buffered']
    #allocation9 [shape = 's32[1]{0}', space=sflag, size = 0x4, scoped, tag = 'scoped memory for tpu_custom_call.1']
    #allocation10 [shape = 'u8[4096]{0}', space=vmem, size = 0x1000, scoped, tag = 'output window, operand 0, single buffered']
    #allocation11 [shape = 'u8[512]{0}', space=vmem, size = 0x400, scoped, tag = 'output window, operand 1, single buffered']
    #allocation12 [shape = 's32[1]{0}', space=sflag, size = 0x4, scoped, tag = 'scoped memory for tpu_custom_call.1']
    %16 = vsyncpa [#allocation3], 0
    %17 = vsyncpa [#allocation6], 0
    %18 = vsyncpa [#allocation9], 0
    %19 = vsyncpa [#allocation4], 0
    %20 = vsyncpa [#allocation12], 0
    // Predicated region
    $region2: #{tpu_custom_call.1} parent=1 // pred_check
      _
    $region3: #{tpu_custom_call.1} parent=1 // pred_check_branch
      %22 = sbr.rel (0) target = $region5
    $region4: #{tpu_custom_call.1} parent=1 // pred_region
      _
    $region5: #{tpu_custom_call.1} parent=1 // pred_fallthru
      _
    // Predicated region
    $region6: #{tpu_custom_call.1} parent=1 // pred_check
      _
    $region7: #{tpu_custom_call.1} parent=1 // pred_check_branch
      %24 = sbr.rel (0) target = $region9
    $region8: #{tpu_custom_call.1} parent=1 // pred_region
      %s26 = ssub.s32 2048, 2048
      %27 = vsyncadd [#allocation3], %s26
      %s28 = sshll.u32 [#allocation2], 4
      %s29 = int_to_ptr.vmem [resolvable:$true] %s28
      %34 = dma.hbm_to_vmem [thread:$0]  %s1, 2048, %s29, [#allocation3], 128, 128, 8
    $region9: #{tpu_custom_call.1} parent=1 // pred_fallthru
      _
    // Predicated region
    $region10: #{tpu_custom_call.1} parent=1 // pred_check
      _
    $region11: #{tpu_custom_call.1} parent=1 // pred_check_branch
      %36 = sbr.rel (0) target = $region13
    $region12: #{tpu_custom_call.1} parent=1 // pred_region
      _
    $region13: #{tpu_custom_call.1} parent=1 // pred_fallthru
      _
    // Predicated region
    $region14: #{tpu_custom_call.1} parent=1 // pred_check
      _
    $region15: #{tpu_custom_call.1} parent=1 // pred_check_branch
      %38 = sbr.rel (0) target = $region17
    $region16: #{tpu_custom_call.1} parent=1 // pred_region
      %s40 = ssub.s32 6144, 6144
      %41 = vsyncadd [#allocation6], %s40
      %s42 = sshll.u32 [#allocation5], 4
      %s43 = int_to_ptr.vmem [resolvable:$true] %s42
      %48 = dma.hbm_to_vmem [thread:$0]  %s3, 6144, %s43, [#allocation6], 384, 384, 24
    $region17: #{tpu_custom_call.1} parent=1 // pred_fallthru
      _
    // Predicated region
    $region18: #{tpu_custom_call.1} parent=1 // pred_check
      _
    $region19: #{tpu_custom_call.1} parent=1 // pred_check_branch
      %50 = sbr.rel (0) target = $region21
    $region20: #{tpu_custom_call.1} parent=1 // pred_region
      %s52 = ssub.s32 6144, 6144
      %53 = vsyncadd [#allocation6], %s52
      %s54 = sshll.u32 [#allocation7], 4
      %s55 = int_to_ptr.vmem [resolvable:$true] %s54
      %60 = dma.hbm_to_vmem [thread:$0]  %s4, 6144, %s55, [#allocation6], 384, 384, 24
    $region21: #{tpu_custom_call.1} parent=1 // pred_fallthru
      _
    // Predicated region
    $region22: #{tpu_custom_call.1} parent=1 // pred_check
      _
    $region23: #{tpu_custom_call.1} parent=1 // pred_check_branch
      %62 = sbr.rel (0) target = $region25
    $region24: #{tpu_custom_call.1} parent=1 // pred_region
      _
    $region25: #{tpu_custom_call.1} parent=1 // pred_fallthru
      _
    // Predicated region
    $region26: #{tpu_custom_call.1} parent=1 // pred_check
      _
    $region27: #{tpu_custom_call.1} parent=1 // pred_check_branch
      %64 = sbr.rel (0) target = $region29
    $region28: #{tpu_custom_call.1} parent=1 // pred_region
      _
    $region29: #{tpu_custom_call.1} parent=1 // pred_fallthru
      _
    // Predicated region
    $region30: #{tpu_custom_call.1} parent=1 // pred_check
      _
    $region31: #{tpu_custom_call.1} parent=1 // pred_check_branch
      %66 = sbr.rel (0) target = $region33
    $region32: #{tpu_custom_call.1} parent=1 // pred_region
      %s68 = ssub.s32 2048, 2048
      %69 = vsyncadd [#allocation9], %s68
      %s70 = sshll.u32 [#allocation8], 4
      %s71 = int_to_ptr.vmem [resolvable:$true] %s70
      %76 = dma.hbm_to_vmem [thread:$0]  %s7, 2048, %s71, [#allocation9], 128, 128, 8
    $region33: #{tpu_custom_call.1} parent=1 // pred_fallthru
      _
    // Predicated region
    $region34: #{tpu_custom_call.1} parent=1 // pred_check
      _
    $region35: #{tpu_custom_call.1} parent=1 // pred_check_branch
      %78 = sbr.rel (0) target = $region37
    $region36: #{tpu_custom_call.1} parent=1 // pred_region
      _
    $region37: #{tpu_custom_call.1} parent=1 // pred_fallthru
      _
    // Predicated region
    $region38: #{tpu_custom_call.1} parent=1 // pred_check
      _
    $region39: #{tpu_custom_call.1} parent=1 // pred_check_branch
      %80 = sbr.rel (0) target = $region41
    $region40: #{tpu_custom_call.1} parent=1 // pred_region
      %81 = dma.done [#allocation3], 2048
    $region41: #{tpu_custom_call.1} parent=1 // pred_fallthru
      _
    // Predicated region
    $region42: #{tpu_custom_call.1} parent=1 // pred_check
      _
    $region43: #{tpu_custom_call.1} parent=1 // pred_check_branch
      %83 = sbr.rel (0) target = $region45
    $region44: #{tpu_custom_call.1} parent=1 // pred_region
      %84 = dma.done [#allocation6], 6144
    $region45: #{tpu_custom_call.1} parent=1 // pred_fallthru
      _
    // Predicated region
    $region46: #{tpu_custom_call.1} parent=1 // pred_check
      _
    $region47: #{tpu_custom_call.1} parent=1 // pred_check_branch
      %86 = sbr.rel (0) target = $region49
    $region48: #{tpu_custom_call.1} parent=1 // pred_region
      %87 = dma.done [#allocation6], 6144
    $region49: #{tpu_custom_call.1} parent=1 // pred_fallthru
      _
    // Predicated region
    $region50: #{tpu_custom_call.1} parent=1 // pred_check
      _
    $region51: #{tpu_custom_call.1} parent=1 // pred_check_branch
      %89 = sbr.rel (0) target = $region53
    $region52: #{tpu_custom_call.1} parent=1 // pred_region
      %90 = dma.done [#allocation9], 2048
    $region53: #{tpu_custom_call.1} parent=1 // pred_fallthru
      _
    %v91 = vlaneseq
    %v92 = vand.u32 %v91, 127
    %v93 = vld [vmem:[%s0] sm:$0xff]
    %94 = vset.pattern.permute.xlu0 0
    %95 = vperm.xlu0 %94, %v93
    %v96 = vpop.permute.xlu0 %95
    %vm97 = vcmp.eq.s32.totalorder %v92, %v96
    %v98 = vsel %vm97, 1, 0
    %v99 = vcvt.s32.f32 %v98
    %v100 = vld [vmem:[#allocation2] sm:$0xff]
    %v101 = vld [vmem:[#allocation2 + $0x8] sm:$0xff]
    %v102 = vld [vmem:[#allocation2 + $0x10] sm:$0xff]
    %v103 = vld [vmem:[#allocation2 + $0x18] sm:$0xff]
    %v104 = vld [vmem:[#allocation2 + $0x20] sm:$0xff]
    %v105 = vld [vmem:[#allocation2 + $0x28] sm:$0xff]
    %v106 = vld [vmem:[#allocation2 + $0x30] sm:$0xff]
    %v107 = vld [vmem:[#allocation2 + $0x38] sm:$0xff]
    %v108 = vld [vmem:[#allocation2 + $0x40] sm:$0xff]
    %v109 = vld [vmem:[#allocation2 + $0x48] sm:$0xff]
    %v110 = vld [vmem:[#allocation2 + $0x50] sm:$0xff]
    %v111 = vld [vmem:[#allocation2 + $0x58] sm:$0xff]
    %v112 = vld [vmem:[#allocation2 + $0x60] sm:$0xff]
    %v113 = vld [vmem:[#allocation2 + $0x68] sm:$0xff]
    %v114 = vld [vmem:[#allocation2 + $0x70] sm:$0xff]
    %v115 = vld [vmem:[#allocation2 + $0x78] sm:$0xff]
    %116 = vmatprep.subr.mxu0 0.0
    %117 = vmatpush1.msra.mxu0 %v115
    %118 = vmatprep.subr.mxu0 0.0
    %119 = vmatpush1.msra.mxu0 %v114
    %120 = vmatprep.subr.mxu0 0.0
    %121 = vmatpush1.msra.mxu0 %v113
    %122 = vmatprep.subr.mxu0 0.0
    %123 = vmatpush1.msra.mxu0 %v112
    %124 = vmatprep.subr.mxu0 0.0
    %125 = vmatpush1.msra.mxu0 %v111
    %126 = vmatprep.subr.mxu0 0.0
    %127 = vmatpush1.msra.mxu0 %v110
    %128 = vmatprep.subr.mxu0 0.0
    %129 = vmatpush1.msra.mxu0 %v109
    %130 = vmatprep.subr.mxu0 0.0
    %131 = vmatpush1.msra.mxu0 %v108
    %132 = vmatprep.subr.mxu0 0.0
    %133 = vmatpush1.msra.mxu0 %v107
    %134 = vmatprep.subr.mxu0 0.0
    %135 = vmatpush1.msra.mxu0 %v106
    %136 = vmatprep.subr.mxu0 0.0
    %137 = vmatpush1.msra.mxu0 %v105
    %138 = vmatprep.subr.mxu0 0.0
    %139 = vmatpush1.msra.mxu0 %v104
    %140 = vmatprep.subr.mxu0 0.0
    %141 = vmatpush1.msra.mxu0 %v103
    %142 = vmatprep.subr.mxu0 0.0
    %143 = vmatpush1.msra.mxu0 %v102
    %144 = vmatprep.subr.mxu0 0.0
    %145 = vmatpush1.msra.mxu0 %v101
    %146 = vmatprep.subr.mxu0 0.0
    %147 = vmatpush1.msra.mxu0 %v100
    %148 = vmatprep.subr.mxu0 0.0
    %149 = vmatpush2.msra.mxu0 0.0
    %150 = vmatprep.subr.mxu0 0.0
    %151 = vmatpush2.msra.mxu0 0.0
    %152 = vmatprep.subr.mxu0 0.0
    %153 = vmatpush2.msra.mxu0 0.0
    %154 = vmatprep.subr.mxu0 0.0
    %155 = vmatpush2.msra.mxu0 0.0
    %156 = vmatprep.subr.mxu0 0.0
    %157 = vmatpush2.msra.mxu0 0.0
    %158 = vmatprep.subr.mxu0 0.0
    %159 = vmatpush2.msra.mxu0 0.0
    %160 = vmatprep.subr.mxu0 0.0
    %161 = vmatpush2.msra.mxu0 0.0
    %162 = vmatprep.subr.mxu0 0.0
    %163 = vmatpush2.msra.mxu0 0.0
    %164 = vmatprep.subr.mxu0 0.0
    %165 = vmatpush2.msra.mxu0 0.0
    %166 = vmatprep.subr.mxu0 0.0
    %167 = vmatpush2.msra.mxu0 0.0
    %168 = vmatprep.subr.mxu0 0.0
    %169 = vmatpush2.msra.mxu0 0.0
    %170 = vmatprep.subr.mxu0 0.0
    %171 = vmatpush2.msra.mxu0 0.0
    %172 = vmatprep.subr.mxu0 0.0
    %173 = vmatpush2.msra.mxu0 0.0
    %174 = vmatprep.subr.mxu0 0.0
    %175 = vmatpush2.msra.mxu0 0.0
    %176 = vmatprep.subr.mxu0 0.0
    %177 = vmatpush2.msra.mxu0 0.0
    %178 = vmatprep.subr.mxu0 0.0
    %179 = vmatpush2.msra.mxu0 0.0
    %180 = vmatprep.mubr.f32.mxu0 0.0
    %181 = vmatmul.mubr.f32.gmra.mxu0 %v99
    %v182 = vpop.f32.mrf.mxu0
    %v183 = vadd.f32 0.0, %v182
    %v184 = vpop.f32.mrf.mxu0
    %185 = vdwg.mxu0
    %v186 = vmax.f32 %v183, 0.0
    %v187 = vld [vmem:[#allocation5] sm:$0xff]
    %v188 = vld [vmem:[#allocation5 + $0x8] sm:$0xff]
    %v189 = vld [vmem:[#allocation5 + $0x10] sm:$0xff]
    %v190 = vld [vmem:[#allocation5 + $0x18] sm:$0xff]
    %v191 = vld [vmem:[#allocation5 + $0x20] sm:$0xff]
    %v192 = vld [vmem:[#allocation5 + $0x28] sm:$0xff]
    %v193 = vld [vmem:[#allocation5 + $0x30] sm:$0xff]
    %v194 = vld [vmem:[#allocation5 + $0x38] sm:$0xff]
    %v195 = vld [vmem:[#allocation5 + $0x40] sm:$0xff]
    %v196 = vld [vmem:[#allocation5 + $0x48] sm:$0xff]
    %v197 = vld [vmem:[#allocation5 + $0x50] sm:$0xff]
    %v198 = vld [vmem:[#allocation5 + $0x58] sm:$0xff]
    %v199 = vld [vmem:[#allocation5 + $0x60] sm:$0xff]
    %v200 = vld [vmem:[#allocation5 + $0x68] sm:$0xff]
    %v201 = vld [vmem:[#allocation5 + $0x70] sm:$0xff]
    %v202 = vld [vmem:[#allocation5 + $0x78] sm:$0xff]
    %v203 = vld [vmem:[#allocation5 + $0x80] sm:$0xff]
    %v204 = vld [vmem:[#allocation5 + $0x88] sm:$0xff]
    %v205 = vld [vmem:[#allocation5 + $0x90] sm:$0xff]
    %v206 = vld [vmem:[#allocation5 + $0x98] sm:$0xff]
    %v207 = vld [vmem:[#allocation5 + $0xa0] sm:$0xff]
    %v208 = vld [vmem:[#allocation5 + $0xa8] sm:$0xff]
    %v209 = vld [vmem:[#allocation5 + $0xb0] sm:$0xff]
    %v210 = vld [vmem:[#allocation5 + $0xb8] sm:$0xff]
    %v211 = vld [vmem:[#allocation5 + $0xc0] sm:$0xff]
    %v212 = vld [vmem:[#allocation5 + $0xc8] sm:$0xff]
    %v213 = vld [vmem:[#allocation5 + $0xd0] sm:$0xff]
    %v214 = vld [vmem:[#allocation5 + $0xd8] sm:$0xff]
    %v215 = vld [vmem:[#allocation5 + $0xe0] sm:$0xff]
    %v216 = vld [vmem:[#allocation5 + $0xe8] sm:$0xff]
    %v217 = vld [vmem:[#allocation5 + $0xf0] sm:$0xff]
    %v218 = vld [vmem:[#allocation5 + $0xf8] sm:$0xff]
    %v219 = vld [vmem:[#allocation5 + $0x100] sm:$0xff]
    %v220 = vld [vmem:[#allocation5 + $0x108] sm:$0xff]
    %v221 = vld [vmem:[#allocation5 + $0x110] sm:$0xff]
    %v222 = vld [vmem:[#allocation5 + $0x118] sm:$0xff]
    %v223 = vld [vmem:[#allocation5 + $0x120] sm:$0xff]
    %v224 = vld [vmem:[#allocation5 + $0x128] sm:$0xff]
    %v225 = vld [vmem:[#allocation5 + $0x130] sm:$0xff]
    %v226 = vld [vmem:[#allocation5 + $0x138] sm:$0xff]
    %v227 = vld [vmem:[#allocation5 + $0x140] sm:$0xff]
    %v228 = vld [vmem:[#allocation5 + $0x148] sm:$0xff]
    %v229 = vld [vmem:[#allocation5 + $0x150] sm:$0xff]
    %v230 = vld [vmem:[#allocation5 + $0x158] sm:$0xff]
    %v231 = vld [vmem:[#allocation5 + $0x160] sm:$0xff]
    %v232 = vld [vmem:[#allocation5 + $0x168] sm:$0xff]
    %v233 = vld [vmem:[#allocation5 + $0x170] sm:$0xff]
    %v234 = vld [vmem:[#allocation5 + $0x178] sm:$0xff]
    %v235 = vld [vmem:[%s5] sm:$0x7]
    %v237 = vlaneseq
    %v238 = vshrl.u32 %v237, 7
    %v239 = vsub.s32 0, %v238
    %v240 = vrot.slane %v235, %v239
    %v241 = vlaneseq
    %v242 = vshrl.u32 %v241, 7
    %v243 = vsub.s32 1, %v242
    %v244 = vrot.slane %v235, %v243
    %v245 = vlaneseq
    %v246 = vshrl.u32 %v245, 7
    %v247 = vsub.s32 2, %v246
    %v248 = vrot.slane %v235, %v247
    %252 = vmatprep.subr.mxu0 %v233
    %253 = vmatpush1.msra.mxu0 %v232
    %254 = vmatprep.subr.mxu0 %v230
    %255 = vmatpush1.msra.mxu0 %v229
    %256 = vmatprep.subr.mxu0 %v227
    %257 = vmatpush1.msra.mxu0 %v226
    %258 = vmatprep.subr.mxu0 %v224
    %259 = vmatpush1.msra.mxu0 %v223
    %260 = vmatprep.subr.mxu0 %v221
    %261 = vmatpush1.msra.mxu0 %v220
    %262 = vmatprep.subr.mxu0 %v218
    %263 = vmatpush1.msra.mxu0 %v217
    %264 = vmatprep.subr.mxu0 %v215
    %265 = vmatpush1.msra.mxu0 %v214
    %266 = vmatprep.subr.mxu0 %v212
    %267 = vmatpush1.msra.mxu0 %v211
    %268 = vmatprep.subr.mxu0 %v209
    %269 = vmatpush1.msra.mxu0 %v208
    %270 = vmatprep.subr.mxu0 %v206
    %271 = vmatpush1.msra.mxu0 %v205
    %272 = vmatprep.subr.mxu0 %v203
    %273 = vmatpush1.msra.mxu0 %v202
    %274 = vmatprep.subr.mxu0 %v200
    %275 = vmatpush1.msra.mxu0 %v199
    %276 = vmatprep.subr.mxu0 %v197
    %277 = vmatpush1.msra.mxu0 %v196
    %278 = vmatprep.subr.mxu0 %v194
    %279 = vmatpush1.msra.mxu0 %v193
    %280 = vmatprep.subr.mxu0 %v191
    %281 = vmatpush1.msra.mxu0 %v190
    %282 = vmatprep.subr.mxu0 %v188
    %283 = vmatpush1.msra.mxu0 %v187
    %284 = vmatprep.subr.mxu0 0.0
    %285 = vmatpush2.msra.mxu0 0.0
    %286 = vmatprep.subr.mxu0 0.0
    %287 = vmatpush2.msra.mxu0 0.0
    %288 = vmatprep.subr.mxu0 0.0
    %289 = vmatpush2.msra.mxu0 0.0
    %290 = vmatprep.subr.mxu0 0.0
    %291 = vmatpush2.msra.mxu0 0.0
    %292 = vmatprep.subr.mxu0 0.0
    %293 = vmatpush2.msra.mxu0 0.0
    %294 = vmatprep.subr.mxu0 0.0
    %295 = vmatpush2.msra.mxu0 0.0
    %296 = vmatprep.subr.mxu0 0.0
    %297 = vmatpush2.msra.mxu0 0.0
    %298 = vmatprep.subr.mxu0 0.0
    %299 = vmatpush2.msra.mxu0 0.0
    %300 = vmatprep.subr.mxu0 0.0
    %301 = vmatpush2.msra.mxu0 0.0
    %302 = vmatprep.subr.mxu0 0.0
    %303 = vmatpush2.msra.mxu0 0.0
    %304 = vmatprep.subr.mxu0 0.0
    %305 = vmatpush2.msra.mxu0 0.0
    %306 = vmatprep.subr.mxu0 0.0
    %307 = vmatpush2.msra.mxu0 0.0
    %308 = vmatprep.subr.mxu0 0.0
    %309 = vmatpush2.msra.mxu0 0.0
    %310 = vmatprep.subr.mxu0 0.0
    %311 = vmatpush2.msra.mxu0 0.0
    %312 = vmatprep.subr.mxu0 0.0
    %313 = vmatpush2.msra.mxu0 0.0
    %314 = vmatprep.subr.mxu0 0.0
    %315 = vmatpush2.msra.mxu0 0.0
    %316 = vmatprep.mubr.f32.mxu0 0.0
    %317 = vmatmul.mubr.f32.gmra.mxu0 %v186
    %v318 = vpop.f32.mrf.mxu0
    %v319 = vadd.f32 %v240, %v318
    %v320 = vpop.f32.mrf.mxu0
    %v321 = vadd.f32 %v244, %v320
    %322 = vdwg.mxu0
    %323 = vmatprep.subr.mxu0 0.0
    %324 = vmatpush1.msra.mxu0 %v234
    %325 = vmatprep.subr.mxu0 0.0
    %326 = vmatpush1.msra.mxu0 %v231
    %327 = vmatprep.subr.mxu0 0.0
    %328 = vmatpush1.msra.mxu0 %v228
    %329 = vmatprep.subr.mxu0 0.0
    %330 = vmatpush1.msra.mxu0 %v225
    %331 = vmatprep.subr.mxu0 0.0
    %332 = vmatpush1.msra.mxu0 %v222
    %333 = vmatprep.subr.mxu0 0.0
    %334 = vmatpush1.msra.mxu0 %v219
    %335 = vmatprep.subr.mxu0 0.0
    %336 = vmatpush1.msra.mxu0 %v216
    %337 = vmatprep.subr.mxu0 0.0
    %338 = vmatpush1.msra.mxu0 %v213
    %339 = vmatprep.subr.mxu0 0.0
    %340 = vmatpush1.msra.mxu0 %v210
    %341 = vmatprep.subr.mxu0 0.0
    %342 = vmatpush1.msra.mxu0 %v207
    %343 = vmatprep.subr.mxu0 0.0
    %344 = vmatpush1.msra.mxu0 %v204
    %345 = vmatprep.subr.mxu0 0.0
    %346 = vmatpush1.msra.mxu0 %v201
    %347 = vmatprep.subr.mxu0 0.0
    %348 = vmatpush1.msra.mxu0 %v198
    %349 = vmatprep.subr.mxu0 0.0
    %350 = vmatpush1.msra.mxu0 %v195
    %351 = vmatprep.subr.mxu0 0.0
    %352 = vmatpush1.msra.mxu0 %v192
    %353 = vmatprep.subr.mxu0 0.0
    %354 = vmatpush1.msra.mxu0 %v189
    %355 = vmatprep.subr.mxu0 0.0
    %356 = vmatpush2.msra.mxu0 0.0
    %357 = vmatprep.subr.mxu0 0.0
    %358 = vmatpush2.msra.mxu0 0.0
    %359 = vmatprep.subr.mxu0 0.0
    %360 = vmatpush2.msra.mxu0 0.0
    %361 = vmatprep.subr.mxu0 0.0
    %362 = vmatpush2.msra.mxu0 0.0
    %363 = vmatprep.subr.mxu0 0.0
    %364 = vmatpush2.msra.mxu0 0.0
    %365 = vmatprep.subr.mxu0 0.0
    %366 = vmatpush2.msra.mxu0 0.0
    %367 = vmatprep.subr.mxu0 0.0
    %368 = vmatpush2.msra.mxu0 0.0
    %369 = vmatprep.subr.mxu0 0.0
    %370 = vmatpush2.msra.mxu0 0.0
    %371 = vmatprep.subr.mxu0 0.0
    %372 = vmatpush2.msra.mxu0 0.0
    %373 = vmatprep.subr.mxu0 0.0
    %374 = vmatpush2.msra.mxu0 0.0
    %375 = vmatprep.subr.mxu0 0.0
    %376 = vmatpush2.msra.mxu0 0.0
    %377 = vmatprep.subr.mxu0 0.0
    %378 = vmatpush2.msra.mxu0 0.0
    %379 = vmatprep.subr.mxu0 0.0
    %380 = vmatpush2.msra.mxu0 0.0
    %381 = vmatprep.subr.mxu0 0.0
    %382 = vmatpush2.msra.mxu0 0.0
    %383 = vmatprep.subr.mxu0 0.0
    %384 = vmatpush2.msra.mxu0 0.0
    %385 = vmatprep.subr.mxu0 0.0
    %386 = vmatpush2.msra.mxu0 0.0
    %387 = vmatprep.mubr.f32.mxu0 0.0
    %388 = vmatmul.mubr.f32.gmra.mxu0 %v186
    %v389 = vpop.f32.mrf.mxu0
    %v390 = vadd.f32 %v248, %v389
    %v391 = vpop.f32.mrf.mxu0
    %392 = vdwg.mxu0
    %v393 = vld [vmem:[#allocation7] sm:$0xff]
    %v394 = vld [vmem:[#allocation7 + $0x8] sm:$0xff]
    %v395 = vld [vmem:[#allocation7 + $0x10] sm:$0xff]
    %v396 = vld [vmem:[#allocation7 + $0x18] sm:$0xff]
    %v397 = vld [vmem:[#allocation7 + $0x20] sm:$0xff]
    %v398 = vld [vmem:[#allocation7 + $0x28] sm:$0xff]
    %v399 = vld [vmem:[#allocation7 + $0x30] sm:$0xff]
    %v400 = vld [vmem:[#allocation7 + $0x38] sm:$0xff]
    %v401 = vld [vmem:[#allocation7 + $0x40] sm:$0xff]
    %v402 = vld [vmem:[#allocation7 + $0x48] sm:$0xff]
    %v403 = vld [vmem:[#allocation7 + $0x50] sm:$0xff]
    %v404 = vld [vmem:[#allocation7 + $0x58] sm:$0xff]
    %v405 = vld [vmem:[#allocation7 + $0x60] sm:$0xff]
    %v406 = vld [vmem:[#allocation7 + $0x68] sm:$0xff]
    %v407 = vld [vmem:[#allocation7 + $0x70] sm:$0xff]
    %v408 = vld [vmem:[#allocation7 + $0x78] sm:$0xff]
    %v409 = vld [vmem:[#allocation7 + $0x80] sm:$0xff]
    %v410 = vld [vmem:[#allocation7 + $0x88] sm:$0xff]
    %v411 = vld [vmem:[#allocation7 + $0x90] sm:$0xff]
    %v412 = vld [vmem:[#allocation7 + $0x98] sm:$0xff]
    %v413 = vld [vmem:[#allocation7 + $0xa0] sm:$0xff]
    %v414 = vld [vmem:[#allocation7 + $0xa8] sm:$0xff]
    %v415 = vld [vmem:[#allocation7 + $0xb0] sm:$0xff]
    %v416 = vld [vmem:[#allocation7 + $0xb8] sm:$0xff]
    %v417 = vld [vmem:[#allocation7 + $0xc0] sm:$0xff]
    %v418 = vld [vmem:[#allocation7 + $0xc8] sm:$0xff]
    %v419 = vld [vmem:[#allocation7 + $0xd0] sm:$0xff]
    %v420 = vld [vmem:[#allocation7 + $0xd8] sm:$0xff]
    %v421 = vld [vmem:[#allocation7 + $0xe0] sm:$0xff]
    %v422 = vld [vmem:[#allocation7 + $0xe8] sm:$0xff]
    %v423 = vld [vmem:[#allocation7 + $0xf0] sm:$0xff]
    %v424 = vld [vmem:[#allocation7 + $0xf8] sm:$0xff]
    %v425 = vld [vmem:[#allocation7 + $0x100] sm:$0xff]
    %v426 = vld [vmem:[#allocation7 + $0x108] sm:$0xff]
    %v427 = vld [vmem:[#allocation7 + $0x110] sm:$0xff]
    %v428 = vld [vmem:[#allocation7 + $0x118] sm:$0xff]
    %v429 = vld [vmem:[#allocation7 + $0x120] sm:$0xff]
    %v430 = vld [vmem:[#allocation7 + $0x128] sm:$0xff]
    %v431 = vld [vmem:[#allocation7 + $0x130] sm:$0xff]
    %v432 = vld [vmem:[#allocation7 + $0x138] sm:$0xff]
    %v433 = vld [vmem:[#allocation7 + $0x140] sm:$0xff]
    %v434 = vld [vmem:[#allocation7 + $0x148] sm:$0xff]
    %v435 = vld [vmem:[#allocation7 + $0x150] sm:$0xff]
    %v436 = vld [vmem:[#allocation7 + $0x158] sm:$0xff]
    %v437 = vld [vmem:[#allocation7 + $0x160] sm:$0xff]
    %v438 = vld [vmem:[#allocation7 + $0x168] sm:$0xff]
    %v439 = vld [vmem:[#allocation7 + $0x170] sm:$0xff]
    %v440 = vld [vmem:[#allocation7 + $0x178] sm:$0xff]
    %v441 = vld [vmem:[%s6] sm:$0x1]
    %v442 = vld [vmem:[%s2] sm:$0x1]
    %443 = vmatprep.subr.mxu0 %v439
    %444 = vmatpush1.msra.mxu0 %v438
    %445 = vmatprep.subr.mxu0 %v436
    %446 = vmatpush1.msra.mxu0 %v435
    %447 = vmatprep.subr.mxu0 %v433
    %448 = vmatpush1.msra.mxu0 %v432
    %449 = vmatprep.subr.mxu0 %v430
    %450 = vmatpush1.msra.mxu0 %v429
    %451 = vmatprep.subr.mxu0 %v427
    %452 = vmatpush1.msra.mxu0 %v426
    %453 = vmatprep.subr.mxu0 %v424
    %454 = vmatpush1.msra.mxu0 %v423
    %455 = vmatprep.subr.mxu0 %v421
    %456 = vmatpush1.msra.mxu0 %v420
    %457 = vmatprep.subr.mxu0 %v418
    %458 = vmatpush1.msra.mxu0 %v417
    %459 = vmatprep.subr.mxu0 %v415
    %460 = vmatpush1.msra.mxu0 %v414
    %461 = vmatprep.subr.mxu0 %v412
    %462 = vmatpush1.msra.mxu0 %v411
    %463 = vmatprep.subr.mxu0 %v409
    %464 = vmatpush1.msra.mxu0 %v408
    %465 = vmatprep.subr.mxu0 %v406
    %466 = vmatpush1.msra.mxu0 %v405
    %467 = vmatprep.subr.mxu0 %v403
    %468 = vmatpush1.msra.mxu0 %v402
    %469 = vmatprep.subr.mxu0 %v400
    %470 = vmatpush1.msra.mxu0 %v399
    %471 = vmatprep.subr.mxu0 %v397
    %472 = vmatpush1.msra.mxu0 %v396
    %473 = vmatprep.subr.mxu0 %v394
    %474 = vmatpush1.msra.mxu0 %v393
    %475 = vmatprep.subr.mxu0 0.0
    %476 = vmatpush2.msra.mxu0 0.0
    %477 = vmatprep.subr.mxu0 0.0
    %478 = vmatpush2.msra.mxu0 0.0
    %479 = vmatprep.subr.mxu0 0.0
    %480 = vmatpush2.msra.mxu0 0.0
    %481 = vmatprep.subr.mxu0 0.0
    %482 = vmatpush2.msra.mxu0 0.0
    %483 = vmatprep.subr.mxu0 0.0
    %484 = vmatpush2.msra.mxu0 0.0
    %485 = vmatprep.subr.mxu0 0.0
    %486 = vmatpush2.msra.mxu0 0.0
    %487 = vmatprep.subr.mxu0 0.0
    %488 = vmatpush2.msra.mxu0 0.0
    %489 = vmatprep.subr.mxu0 0.0
    %490 = vmatpush2.msra.mxu0 0.0
    %491 = vmatprep.subr.mxu0 0.0
    %492 = vmatpush2.msra.mxu0 0.0
    %493 = vmatprep.subr.mxu0 0.0
    %494 = vmatpush2.msra.mxu0 0.0
    %495 = vmatprep.subr.mxu0 0.0
    %496 = vmatpush2.msra.mxu0 0.0
    %497 = vmatprep.subr.mxu0 0.0
    %498 = vmatpush2.msra.mxu0 0.0
    %499 = vmatprep.subr.mxu0 0.0
    %500 = vmatpush2.msra.mxu0 0.0
    %501 = vmatprep.subr.mxu0 0.0
    %502 = vmatpush2.msra.mxu0 0.0
    %503 = vmatprep.subr.mxu0 0.0
    %504 = vmatpush2.msra.mxu0 0.0
    %505 = vmatprep.subr.mxu0 0.0
    %506 = vmatpush2.msra.mxu0 0.0
    %507 = vmatprep.mubr.f32.mxu0 0.0
    %508 = vmatmul.mubr.f32.gmra.mxu0 %v442
    %v509 = vpop.f32.mrf.mxu0
    %v510 = vadd.f32 0.0, %v509
    %v511 = vpop.f32.mrf.mxu0
    %v512 = vadd.f32 0.0, %v511
    %513 = vdwg.mxu0
    %514 = vmatprep.subr.mxu0 0.0
    %515 = vmatpush1.msra.mxu0 %v440
    %516 = vmatprep.subr.mxu0 0.0
    %517 = vmatpush1.msra.mxu0 %v437
    %518 = vmatprep.subr.mxu0 0.0
    %519 = vmatpush1.msra.mxu0 %v434
    %520 = vmatprep.subr.mxu0 0.0
    %521 = vmatpush1.msra.mxu0 %v431
    %522 = vmatprep.subr.mxu0 0.0
    %523 = vmatpush1.msra.mxu0 %v428
    %524 = vmatprep.subr.mxu0 0.0
    %525 = vmatpush1.msra.mxu0 %v425
    %526 = vmatprep.subr.mxu0 0.0
    %527 = vmatpush1.msra.mxu0 %v422
    %528 = vmatprep.subr.mxu0 0.0
    %529 = vmatpush1.msra.mxu0 %v419
    %530 = vmatprep.subr.mxu0 0.0
    %531 = vmatpush1.msra.mxu0 %v416
    %532 = vmatprep.subr.mxu0 0.0
    %533 = vmatpush1.msra.mxu0 %v413
    %534 = vmatprep.subr.mxu0 0.0
    %535 = vmatpush1.msra.mxu0 %v410
    %536 = vmatprep.subr.mxu0 0.0
    %537 = vmatpush1.msra.mxu0 %v407
    %538 = vmatprep.subr.mxu0 0.0
    %539 = vmatpush1.msra.mxu0 %v404
    %540 = vmatprep.subr.mxu0 0.0
    %541 = vmatpush1.msra.mxu0 %v401
    %542 = vmatprep.subr.mxu0 0.0
    %543 = vmatpush1.msra.mxu0 %v398
    %544 = vmatprep.subr.mxu0 0.0
    %545 = vmatpush1.msra.mxu0 %v395
    %546 = vmatprep.subr.mxu0 0.0
    %547 = vmatpush2.msra.mxu0 0.0
    %548 = vmatprep.subr.mxu0 0.0
    %549 = vmatpush2.msra.mxu0 0.0
    %550 = vmatprep.subr.mxu0 0.0
    %551 = vmatpush2.msra.mxu0 0.0
    %552 = vmatprep.subr.mxu0 0.0
    %553 = vmatpush2.msra.mxu0 0.0
    %554 = vmatprep.subr.mxu0 0.0
    %555 = vmatpush2.msra.mxu0 0.0
    %556 = vmatprep.subr.mxu0 0.0
    %557 = vmatpush2.msra.mxu0 0.0
    %558 = vmatprep.subr.mxu0 0.0
    %559 = vmatpush2.msra.mxu0 0.0
    %560 = vmatprep.subr.mxu0 0.0
    %561 = vmatpush2.msra.mxu0 0.0
    %562 = vmatprep.subr.mxu0 0.0
    %563 = vmatpush2.msra.mxu0 0.0
    %564 = vmatprep.subr.mxu0 0.0
    %565 = vmatpush2.msra.mxu0 0.0
    %566 = vmatprep.subr.mxu0 0.0
    %567 = vmatpush2.msra.mxu0 0.0
    %568 = vmatprep.subr.mxu0 0.0
    %569 = vmatpush2.msra.mxu0 0.0
    %570 = vmatprep.subr.mxu0 0.0
    %571 = vmatpush2.msra.mxu0 0.0
    %572 = vmatprep.subr.mxu0 0.0
    %573 = vmatpush2.msra.mxu0 0.0
    %574 = vmatprep.subr.mxu0 0.0
    %575 = vmatpush2.msra.mxu0 0.0
    %576 = vmatprep.subr.mxu0 0.0
    %577 = vmatpush2.msra.mxu0 0.0
    %578 = vmatprep.mubr.f32.mxu0 0.0
    %579 = vmatmul.mubr.f32.gmra.mxu0 %v442
    %v580 = vpop.f32.mrf.mxu0
    %v581 = vadd.f32 0.0, %v580
    %v582 = vpop.f32.mrf.mxu0
    %583 = vdwg.mxu0
    %v584 = vadd.f32 %v319, %v510
    %v585 = vxor.u32 %v584, 2147483648
    %v586 = vmul.f32 %v585, 1.442695
    %v587 = vpow.pop %v586
    %v588 = vadd.f32 %v587, 1.0
    %v589 = vrcp.pop %v588
    %v590 = vmul.f32 1.0, %v589
    %v591 = vadd.f32 %v321, %v512
    %v592 = vxor.u32 %v591, 2147483648
    %v593 = vmul.f32 %v592, 1.442695
    %v594 = vpow.pop %v593
    %v595 = vadd.f32 %v594, 1.0
    %v596 = vrcp.pop %v595
    %v597 = vmul.f32 1.0, %v596
    %v598 = vadd.f32 %v581, %v441
    %v599 = vmul.f32 %v590, %v598
    %v600 = vadd.f32 %v390, %v599
    %v601 = vtanh.pop %v600
    %v602 = vsub.f32 1.0, %v597
    %v603 = vmul.f32 %v602, %v601
    %v604 = vmul.f32 %v597, %v442
    %v605 = vadd.f32 %v603, %v604
    %606 = vmatprep.subr.mxu0 %v439
    %607 = vmatpush1.msra.mxu0 %v438
    %608 = vmatprep.subr.mxu0 %v436
    %609 = vmatpush1.msra.mxu0 %v435
    %610 = vmatprep.subr.mxu0 %v433
    %611 = vmatpush1.msra.mxu0 %v432
    %612 = vmatprep.subr.mxu0 %v430
    %613 = vmatpush1.msra.mxu0 %v429
    %614 = vmatprep.subr.mxu0 %v427
    %615 = vmatpush1.msra.mxu0 %v426
    %616 = vmatprep.subr.mxu0 %v424
    %617 = vmatpush1.msra.mxu0 %v423
    %618 = vmatprep.subr.mxu0 %v421
    %619 = vmatpush1.msra.mxu0 %v420
    %620 = vmatprep.subr.mxu0 %v418
    %621 = vmatpush1.msra.mxu0 %v417
    %622 = vmatprep.subr.mxu0 %v415
    %623 = vmatpush1.msra.mxu0 %v414
    %624 = vmatprep.subr.mxu0 %v412
    %625 = vmatpush1.msra.mxu0 %v411
    %626 = vmatprep.subr.mxu0 %v409
    %627 = vmatpush1.msra.mxu0 %v408
    %628 = vmatprep.subr.mxu0 %v406
    %629 = vmatpush1.msra.mxu0 %v405
    %630 = vmatprep.subr.mxu0 %v403
    %631 = vmatpush1.msra.mxu0 %v402
    %632 = vmatprep.subr.mxu0 %v400
    %633 = vmatpush1.msra.mxu0 %v399
    %634 = vmatprep.subr.mxu0 %v397
    %635 = vmatpush1.msra.mxu0 %v396
    %636 = vmatprep.subr.mxu0 %v394
    %637 = vmatpush1.msra.mxu0 %v393
    %638 = vmatprep.subr.mxu0 0.0
    %639 = vmatpush2.msra.mxu0 0.0
    %640 = vmatprep.subr.mxu0 0.0
    %641 = vmatpush2.msra.mxu0 0.0
    %642 = vmatprep.subr.mxu0 0.0
    %643 = vmatpush2.msra.mxu0 0.0
    %644 = vmatprep.subr.mxu0 0.0
    %645 = vmatpush2.msra.mxu0 0.0
    %646 = vmatprep.subr.mxu0 0.0
    %647 = vmatpush2.msra.mxu0 0.0
    %648 = vmatprep.subr.mxu0 0.0
    %649 = vmatpush2.msra.mxu0 0.0
    %650 = vmatprep.subr.mxu0 0.0
    %651 = vmatpush2.msra.mxu0 0.0
    %652 = vmatprep.subr.mxu0 0.0
    %653 = vmatpush2.msra.mxu0 0.0
    %654 = vmatprep.subr.mxu0 0.0
    %655 = vmatpush2.msra.mxu0 0.0
    %656 = vmatprep.subr.mxu0 0.0
    %657 = vmatpush2.msra.mxu0 0.0
    %658 = vmatprep.subr.mxu0 0.0
    %659 = vmatpush2.msra.mxu0 0.0
    %660 = vmatprep.subr.mxu0 0.0
    %661 = vmatpush2.msra.mxu0 0.0
    %662 = vmatprep.subr.mxu0 0.0
    %663 = vmatpush2.msra.mxu0 0.0
    %664 = vmatprep.subr.mxu0 0.0
    %665 = vmatpush2.msra.mxu0 0.0
    %666 = vmatprep.subr.mxu0 0.0
    %667 = vmatpush2.msra.mxu0 0.0
    %668 = vmatprep.subr.mxu0 0.0
    %669 = vmatpush2.msra.mxu0 0.0
    %670 = vmatprep.mubr.f32.mxu0 0.0
    %671 = vmatmul.mubr.f32.gmra.mxu0 %v605
    %v672 = vpop.f32.mrf.mxu0
    %v673 = vadd.f32 0.0, %v672
    %v674 = vpop.f32.mrf.mxu0
    %v675 = vadd.f32 0.0, %v674
    %676 = vdwg.mxu0
    %677 = vmatprep.subr.mxu0 0.0
    %678 = vmatpush1.msra.mxu0 %v440
    %679 = vmatprep.subr.mxu0 0.0
    %680 = vmatpush1.msra.mxu0 %v437
    %681 = vmatprep.subr.mxu0 0.0
    %682 = vmatpush1.msra.mxu0 %v434
    %683 = vmatprep.subr.mxu0 0.0
    %684 = vmatpush1.msra.mxu0 %v431
    %685 = vmatprep.subr.mxu0 0.0
    %686 = vmatpush1.msra.mxu0 %v428
    %687 = vmatprep.subr.mxu0 0.0
    %688 = vmatpush1.msra.mxu0 %v425
    %689 = vmatprep.subr.mxu0 0.0
    %690 = vmatpush1.msra.mxu0 %v422
    %691 = vmatprep.subr.mxu0 0.0
    %692 = vmatpush1.msra.mxu0 %v419
    %693 = vmatprep.subr.mxu0 0.0
    %694 = vmatpush1.msra.mxu0 %v416
    %695 = vmatprep.subr.mxu0 0.0
    %696 = vmatpush1.msra.mxu0 %v413
    %697 = vmatprep.subr.mxu0 0.0
    %698 = vmatpush1.msra.mxu0 %v410
    %699 = vmatprep.subr.mxu0 0.0
    %700 = vmatpush1.msra.mxu0 %v407
    %701 = vmatprep.subr.mxu0 0.0
    %702 = vmatpush1.msra.mxu0 %v404
    %703 = vmatprep.subr.mxu0 0.0
    %704 = vmatpush1.msra.mxu0 %v401
    %705 = vmatprep.subr.mxu0 0.0
    %706 = vmatpush1.msra.mxu0 %v398
    %707 = vmatprep.subr.mxu0 0.0
    %708 = vmatpush1.msra.mxu0 %v395
    %709 = vmatprep.subr.mxu0 0.0
    %710 = vmatpush2.msra.mxu0 0.0
    %711 = vmatprep.subr.mxu0 0.0
    %712 = vmatpush2.msra.mxu0 0.0
    %713 = vmatprep.subr.mxu0 0.0
    %714 = vmatpush2.msra.mxu0 0.0
    %715 = vmatprep.subr.mxu0 0.0
    %716 = vmatpush2.msra.mxu0 0.0
    %717 = vmatprep.subr.mxu0 0.0
    %718 = vmatpush2.msra.mxu0 0.0
    %719 = vmatprep.subr.mxu0 0.0
    %720 = vmatpush2.msra.mxu0 0.0
    %721 = vmatprep.subr.mxu0 0.0
    %722 = vmatpush2.msra.mxu0 0.0
    %723 = vmatprep.subr.mxu0 0.0
    %724 = vmatpush2.msra.mxu0 0.0
    %725 = vmatprep.subr.mxu0 0.0
    %726 = vmatpush2.msra.mxu0 0.0
    %727 = vmatprep.subr.mxu0 0.0
    %728 = vmatpush2.msra.mxu0 0.0
    %729 = vmatprep.subr.mxu0 0.0
    %730 = vmatpush2.msra.mxu0 0.0
    %731 = vmatprep.subr.mxu0 0.0
    %732 = vmatpush2.msra.mxu0 0.0
    %733 = vmatprep.subr.mxu0 0.0
    %734 = vmatpush2.msra.mxu0 0.0
    %735 = vmatprep.subr.mxu0 0.0
    %736 = vmatpush2.msra.mxu0 0.0
    %737 = vmatprep.subr.mxu0 0.0
    %738 = vmatpush2.msra.mxu0 0.0
    %739 = vmatprep.subr.mxu0 0.0
    %740 = vmatpush2.msra.mxu0 0.0
    %741 = vmatprep.mubr.f32.mxu0 0.0
    %742 = vmatmul.mubr.f32.gmra.mxu0 %v605
    %v743 = vpop.f32.mrf.mxu0
    %v744 = vadd.f32 0.0, %v743
    %v745 = vpop.f32.mrf.mxu0
    %746 = vdwg.mxu0
    %v748 = vrot.slane %v673, 7
    %v750 = vadd.f32 %v319, %v748
    %v751 = vxor.u32 %v750, 2147483648
    %v752 = vmul.f32 %v751, 1.442695
    %v753 = vpow.pop %v752
    %v754 = vadd.f32 %v753, 1.0
    %v755 = vrcp.pop %v754
    %v756 = vmul.f32 1.0, %v755
    %v758 = vrot.slane %v675, 7
    %v760 = vadd.f32 %v321, %v758
    %v761 = vxor.u32 %v760, 2147483648
    %v762 = vmul.f32 %v761, 1.442695
    %v763 = vpow.pop %v762
    %v764 = vadd.f32 %v763, 1.0
    %v765 = vrcp.pop %v764
    %v766 = vmul.f32 1.0, %v765
    %v767 = vadd.f32 %v744, %v441
    %v769 = vrot.slane %v767, 7
    %v771 = vmul.f32 %v756, %v769
    %v772 = vadd.f32 %v390, %v771
    %v773 = vtanh.pop %v772
    %v774 = vsub.f32 1.0, %v766
    %v775 = vmul.f32 %v774, %v773
    %v777 = vrot.slane %v605, 7
    %v779 = vmul.f32 %v766, %v777
    %v780 = vadd.f32 %v775, %v779
    %v782 = vrot.slane %v780, 1
    %784 = vmatprep.subr.mxu0 %v439
    %785 = vmatpush1.msra.mxu0 %v438
    %786 = vmatprep.subr.mxu0 %v436
    %787 = vmatpush1.msra.mxu0 %v435
    %788 = vmatprep.subr.mxu0 %v433
    %789 = vmatpush1.msra.mxu0 %v432
    %790 = vmatprep.subr.mxu0 %v430
    %791 = vmatpush1.msra.mxu0 %v429
    %792 = vmatprep.subr.mxu0 %v427
    %793 = vmatpush1.msra.mxu0 %v426
    %794 = vmatprep.subr.mxu0 %v424
    %795 = vmatpush1.msra.mxu0 %v423
    %796 = vmatprep.subr.mxu0 %v421
    %797 = vmatpush1.msra.mxu0 %v420
    %798 = vmatprep.subr.mxu0 %v418
    %799 = vmatpush1.msra.mxu0 %v417
    %800 = vmatprep.subr.mxu0 %v415
    %801 = vmatpush1.msra.mxu0 %v414
    %802 = vmatprep.subr.mxu0 %v412
    %803 = vmatpush1.msra.mxu0 %v411
    %804 = vmatprep.subr.mxu0 %v409
    %805 = vmatpush1.msra.mxu0 %v408
    %806 = vmatprep.subr.mxu0 %v406
    %807 = vmatpush1.msra.mxu0 %v405
    %808 = vmatprep.subr.mxu0 %v403
    %809 = vmatpush1.msra.mxu0 %v402
    %810 = vmatprep.subr.mxu0 %v400
    %811 = vmatpush1.msra.mxu0 %v399
    %812 = vmatprep.subr.mxu0 %v397
    %813 = vmatpush1.msra.mxu0 %v396
    %814 = vmatprep.subr.mxu0 %v394
    %815 = vmatpush1.msra.mxu0 %v393
    %816 = vmatprep.subr.mxu0 0.0
    %817 = vmatpush2.msra.mxu0 0.0
    %818 = vmatprep.subr.mxu0 0.0
    %819 = vmatpush2.msra.mxu0 0.0
    %820 = vmatprep.subr.mxu0 0.0
    %821 = vmatpush2.msra.mxu0 0.0
    %822 = vmatprep.subr.mxu0 0.0
    %823 = vmatpush2.msra.mxu0 0.0
    %824 = vmatprep.subr.mxu0 0.0
    %825 = vmatpush2.msra.mxu0 0.0
    %826 = vmatprep.subr.mxu0 0.0
    %827 = vmatpush2.msra.mxu0 0.0
    %828 = vmatprep.subr.mxu0 0.0
    %829 = vmatpush2.msra.mxu0 0.0
    %830 = vmatprep.subr.mxu0 0.0
    %831 = vmatpush2.msra.mxu0 0.0
    %832 = vmatprep.subr.mxu0 0.0
    %833 = vmatpush2.msra.mxu0 0.0
    %834 = vmatprep.subr.mxu0 0.0
    %835 = vmatpush2.msra.mxu0 0.0
    %836 = vmatprep.subr.mxu0 0.0
    %837 = vmatpush2.msra.mxu0 0.0
    %838 = vmatprep.subr.mxu0 0.0
    %839 = vmatpush2.msra.mxu0 0.0
    %840 = vmatprep.subr.mxu0 0.0
    %841 = vmatpush2.msra.mxu0 0.0
    %842 = vmatprep.subr.mxu0 0.0
    %843 = vmatpush2.msra.mxu0 0.0
    %844 = vmatprep.subr.mxu0 0.0
    %845 = vmatpush2.msra.mxu0 0.0
    %846 = vmatprep.subr.mxu0 0.0
    %847 = vmatpush2.msra.mxu0 0.0
    %848 = vmatprep.mubr.f32.mxu0 0.0
    %849 = vmatmul.mubr.f32.gmra.mxu0 %v782
    %v850 = vpop.f32.mrf.mxu0
    %v851 = vadd.f32 0.0, %v850
    %v852 = vpop.f32.mrf.mxu0
    %v853 = vadd.f32 0.0, %v852
    %854 = vdwg.mxu0
    %855 = vmatprep.subr.mxu0 0.0
    %856 = vmatpush1.msra.mxu0 %v440
    %857 = vmatprep.subr.mxu0 0.0
    %858 = vmatpush1.msra.mxu0 %v437
    %859 = vmatprep.subr.mxu0 0.0
    %860 = vmatpush1.msra.mxu0 %v434
    %861 = vmatprep.subr.mxu0 0.0
    %862 = vmatpush1.msra.mxu0 %v431
    %863 = vmatprep.subr.mxu0 0.0
    %864 = vmatpush1.msra.mxu0 %v428
    %865 = vmatprep.subr.mxu0 0.0
    %866 = vmatpush1.msra.mxu0 %v425
    %867 = vmatprep.subr.mxu0 0.0
    %868 = vmatpush1.msra.mxu0 %v422
    %869 = vmatprep.subr.mxu0 0.0
    %870 = vmatpush1.msra.mxu0 %v419
    %871 = vmatprep.subr.mxu0 0.0
    %872 = vmatpush1.msra.mxu0 %v416
    %873 = vmatprep.subr.mxu0 0.0
    %874 = vmatpush1.msra.mxu0 %v413
    %875 = vmatprep.subr.mxu0 0.0
    %876 = vmatpush1.msra.mxu0 %v410
    %877 = vmatprep.subr.mxu0 0.0
    %878 = vmatpush1.msra.mxu0 %v407
    %879 = vmatprep.subr.mxu0 0.0
    %880 = vmatpush1.msra.mxu0 %v404
    %881 = vmatprep.subr.mxu0 0.0
    %882 = vmatpush1.msra.mxu0 %v401
    %883 = vmatprep.subr.mxu0 0.0
    %884 = vmatpush1.msra.mxu0 %v398
    %885 = vmatprep.subr.mxu0 0.0
    %886 = vmatpush1.msra.mxu0 %v395
    %887 = vmatprep.subr.mxu0 0.0
    %888 = vmatpush2.msra.mxu0 0.0
    %889 = vmatprep.subr.mxu0 0.0
    %890 = vmatpush2.msra.mxu0 0.0
    %891 = vmatprep.subr.mxu0 0.0
    %892 = vmatpush2.msra.mxu0 0.0
    %893 = vmatprep.subr.mxu0 0.0
    %894 = vmatpush2.msra.mxu0 0.0
    %895 = vmatprep.subr.mxu0 0.0
    %896 = vmatpush2.msra.mxu0 0.0
    %897 = vmatprep.subr.mxu0 0.0
    %898 = vmatpush2.msra.mxu0 0.0
    %899 = vmatprep.subr.mxu0 0.0
    %900 = vmatpush2.msra.mxu0 0.0
    %901 = vmatprep.subr.mxu0 0.0
    %902 = vmatpush2.msra.mxu0 0.0
    %903 = vmatprep.subr.mxu0 0.0
    %904 = vmatpush2.msra.mxu0 0.0
    %905 = vmatprep.subr.mxu0 0.0
    %906 = vmatpush2.msra.mxu0 0.0
    %907 = vmatprep.subr.mxu0 0.0
    %908 = vmatpush2.msra.mxu0 0.0
    %909 = vmatprep.subr.mxu0 0.0
    %910 = vmatpush2.msra.mxu0 0.0
    %911 = vmatprep.subr.mxu0 0.0
    %912 = vmatpush2.msra.mxu0 0.0
    %913 = vmatprep.subr.mxu0 0.0
    %914 = vmatpush2.msra.mxu0 0.0
    %915 = vmatprep.subr.mxu0 0.0
    %916 = vmatpush2.msra.mxu0 0.0
    %917 = vmatprep.subr.mxu0 0.0
    %918 = vmatpush2.msra.mxu0 0.0
    %919 = vmatprep.mubr.f32.mxu0 0.0
    %920 = vmatmul.mubr.f32.gmra.mxu0 %v782
    %v921 = vpop.f32.mrf.mxu0
    %v922 = vadd.f32 0.0, %v921
    %v923 = vpop.f32.mrf.mxu0
    %924 = vdwg.mxu0
    %v926 = vrot.slane %v851, 6
    %v928 = vadd.f32 %v319, %v926
    %v929 = vxor.u32 %v928, 2147483648
    %v930 = vmul.f32 %v929, 1.442695
    %v931 = vpow.pop %v930
    %v932 = vadd.f32 %v931, 1.0
    %v933 = vrcp.pop %v932
    %v934 = vmul.f32 1.0, %v933
    %v936 = vrot.slane %v853, 6
    %v938 = vadd.f32 %v321, %v936
    %v939 = vxor.u32 %v938, 2147483648
    %v940 = vmul.f32 %v939, 1.442695
    %v941 = vpow.pop %v940
    %v942 = vadd.f32 %v941, 1.0
    %v943 = vrcp.pop %v942
    %v944 = vmul.f32 1.0, %v943
    %v945 = vadd.f32 %v922, %v441
    %v947 = vrot.slane %v945, 6
    %v949 = vmul.f32 %v934, %v947
    %v950 = vadd.f32 %v390, %v949
    %v951 = vtanh.pop %v950
    %v952 = vsub.f32 1.0, %v944
    %v953 = vmul.f32 %v952, %v951
    %v954 = vrot.slane %v780, 7
    %v956 = vmul.f32 %v944, %v954
    %v957 = vadd.f32 %v953, %v956
    %v959 = vrot.slane %v957, 2
    %961 = vmatprep.subr.mxu0 %v439
    %962 = vmatpush1.msra.mxu0 %v438
    %963 = vmatprep.subr.mxu0 %v436
    %964 = vmatpush1.msra.mxu0 %v435
    %965 = vmatprep.subr.mxu0 %v433
    %966 = vmatpush1.msra.mxu0 %v432
    %967 = vmatprep.subr.mxu0 %v430
    %968 = vmatpush1.msra.mxu0 %v429
    %969 = vmatprep.subr.mxu0 %v427
    %970 = vmatpush1.msra.mxu0 %v426
    %971 = vmatprep.subr.mxu0 %v424
    %972 = vmatpush1.msra.mxu0 %v423
    %973 = vmatprep.subr.mxu0 %v421
    %974 = vmatpush1.msra.mxu0 %v420
    %975 = vmatprep.subr.mxu0 %v418
    %976 = vmatpush1.msra.mxu0 %v417
    %977 = vmatprep.subr.mxu0 %v415
    %978 = vmatpush1.msra.mxu0 %v414
    %979 = vmatprep.subr.mxu0 %v412
    %980 = vmatpush1.msra.mxu0 %v411
    %981 = vmatprep.subr.mxu0 %v409
    %982 = vmatpush1.msra.mxu0 %v408
    %983 = vmatprep.subr.mxu0 %v406
    %984 = vmatpush1.msra.mxu0 %v405
    %985 = vmatprep.subr.mxu0 %v403
    %986 = vmatpush1.msra.mxu0 %v402
    %987 = vmatprep.subr.mxu0 %v400
    %988 = vmatpush1.msra.mxu0 %v399
    %989 = vmatprep.subr.mxu0 %v397
    %990 = vmatpush1.msra.mxu0 %v396
    %991 = vmatprep.subr.mxu0 %v394
    %992 = vmatpush1.msra.mxu0 %v393
    %993 = vmatprep.subr.mxu0 0.0
    %994 = vmatpush2.msra.mxu0 0.0
    %995 = vmatprep.subr.mxu0 0.0
    %996 = vmatpush2.msra.mxu0 0.0
    %997 = vmatprep.subr.mxu0 0.0
    %998 = vmatpush2.msra.mxu0 0.0
    %999 = vmatprep.subr.mxu0 0.0
    %1000 = vmatpush2.msra.mxu0 0.0
    %1001 = vmatprep.subr.mxu0 0.0
    %1002 = vmatpush2.msra.mxu0 0.0
    %1003 = vmatprep.subr.mxu0 0.0
    %1004 = vmatpush2.msra.mxu0 0.0
    %1005 = vmatprep.subr.mxu0 0.0
    %1006 = vmatpush2.msra.mxu0 0.0
    %1007 = vmatprep.subr.mxu0 0.0
    %1008 = vmatpush2.msra.mxu0 0.0
    %1009 = vmatprep.subr.mxu0 0.0
    %1010 = vmatpush2.msra.mxu0 0.0
    %1011 = vmatprep.subr.mxu0 0.0
    %1012 = vmatpush2.msra.mxu0 0.0
    %1013 = vmatprep.subr.mxu0 0.0
    %1014 = vmatpush2.msra.mxu0 0.0
    %1015 = vmatprep.subr.mxu0 0.0
    %1016 = vmatpush2.msra.mxu0 0.0
    %1017 = vmatprep.subr.mxu0 0.0
    %1018 = vmatpush2.msra.mxu0 0.0
    %1019 = vmatprep.subr.mxu0 0.0
    %1020 = vmatpush2.msra.mxu0 0.0
    %1021 = vmatprep.subr.mxu0 0.0
    %1022 = vmatpush2.msra.mxu0 0.0
    %1023 = vmatprep.subr.mxu0 0.0
    %1024 = vmatpush2.msra.mxu0 0.0
    %1025 = vmatprep.mubr.f32.mxu0 0.0
    %1026 = vmatmul.mubr.f32.gmra.mxu0 %v959
    %v1027 = vpop.f32.mrf.mxu0
    %v1028 = vadd.f32 0.0, %v1027
    %v1029 = vpop.f32.mrf.mxu0
    %v1030 = vadd.f32 0.0, %v1029
    %1031 = vdwg.mxu0
    %1032 = vmatprep.subr.mxu0 0.0
    %1033 = vmatpush1.msra.mxu0 %v440
    %1034 = vmatprep.subr.mxu0 0.0
    %1035 = vmatpush1.msra.mxu0 %v437
    %1036 = vmatprep.subr.mxu0 0.0
    %1037 = vmatpush1.msra.mxu0 %v434
    %1038 = vmatprep.subr.mxu0 0.0
    %1039 = vmatpush1.msra.mxu0 %v431
    %1040 = vmatprep.subr.mxu0 0.0
    %1041 = vmatpush1.msra.mxu0 %v428
    %1042 = vmatprep.subr.mxu0 0.0
    %1043 = vmatpush1.msra.mxu0 %v425
    %1044 = vmatprep.subr.mxu0 0.0
    %1045 = vmatpush1.msra.mxu0 %v422
    %1046 = vmatprep.subr.mxu0 0.0
    %1047 = vmatpush1.msra.mxu0 %v419
    %1048 = vmatprep.subr.mxu0 0.0
    %1049 = vmatpush1.msra.mxu0 %v416
    %1050 = vmatprep.subr.mxu0 0.0
    %1051 = vmatpush1.msra.mxu0 %v413
    %1052 = vmatprep.subr.mxu0 0.0
    %1053 = vmatpush1.msra.mxu0 %v410
    %1054 = vmatprep.subr.mxu0 0.0
    %1055 = vmatpush1.msra.mxu0 %v407
    %1056 = vmatprep.subr.mxu0 0.0
    %1057 = vmatpush1.msra.mxu0 %v404
    %1058 = vmatprep.subr.mxu0 0.0
    %1059 = vmatpush1.msra.mxu0 %v401
    %1060 = vmatprep.subr.mxu0 0.0
    %1061 = vmatpush1.msra.mxu0 %v398
    %1062 = vmatprep.subr.mxu0 0.0
    %1063 = vmatpush1.msra.mxu0 %v395
    %1064 = vmatprep.subr.mxu0 0.0
    %1065 = vmatpush2.msra.mxu0 0.0
    %1066 = vmatprep.subr.mxu0 0.0
    %1067 = vmatpush2.msra.mxu0 0.0
    %1068 = vmatprep.subr.mxu0 0.0
    %1069 = vmatpush2.msra.mxu0 0.0
    %1070 = vmatprep.subr.mxu0 0.0
    %1071 = vmatpush2.msra.mxu0 0.0
    %1072 = vmatprep.subr.mxu0 0.0
    %1073 = vmatpush2.msra.mxu0 0.0
    %1074 = vmatprep.subr.mxu0 0.0
    %1075 = vmatpush2.msra.mxu0 0.0
    %1076 = vmatprep.subr.mxu0 0.0
    %1077 = vmatpush2.msra.mxu0 0.0
    %1078 = vmatprep.subr.mxu0 0.0
    %1079 = vmatpush2.msra.mxu0 0.0
    %1080 = vmatprep.subr.mxu0 0.0
    %1081 = vmatpush2.msra.mxu0 0.0
    %1082 = vmatprep.subr.mxu0 0.0
    %1083 = vmatpush2.msra.mxu0 0.0
    %1084 = vmatprep.subr.mxu0 0.0
    %1085 = vmatpush2.msra.mxu0 0.0
    %1086 = vmatprep.subr.mxu0 0.0
    %1087 = vmatpush2.msra.mxu0 0.0
    %1088 = vmatprep.subr.mxu0 0.0
    %1089 = vmatpush2.msra.mxu0 0.0
    %1090 = vmatprep.subr.mxu0 0.0
    %1091 = vmatpush2.msra.mxu0 0.0
    %1092 = vmatprep.subr.mxu0 0.0
    %1093 = vmatpush2.msra.mxu0 0.0
    %1094 = vmatprep.subr.mxu0 0.0
    %1095 = vmatpush2.msra.mxu0 0.0
    %1096 = vmatprep.mubr.f32.mxu0 0.0
    %1097 = vmatmul.mubr.f32.gmra.mxu0 %v959
    %v1098 = vpop.f32.mrf.mxu0
    %v1099 = vadd.f32 0.0, %v1098
    %v1100 = vpop.f32.mrf.mxu0
    %1101 = vdwg.mxu0
    %v1103 = vrot.slane %v1028, 5
    %v1105 = vadd.f32 %v319, %v1103
    %v1106 = vxor.u32 %v1105, 2147483648
    %v1107 = vmul.f32 %v1106, 1.442695
    %v1108 = vpow.pop %v1107
    %v1109 = vadd.f32 %v1108, 1.0
    %v1110 = vrcp.pop %v1109
    %v1111 = vmul.f32 1.0, %v1110
    %v1113 = vrot.slane %v1030, 5
    %v1115 = vadd.f32 %v321, %v1113
    %v1116 = vxor.u32 %v1115, 2147483648
    %v1117 = vmul.f32 %v1116, 1.442695
    %v1118 = vpow.pop %v1117
    %v1119 = vadd.f32 %v1118, 1.0
    %v1120 = vrcp.pop %v1119
    %v1121 = vmul.f32 1.0, %v1120
    %v1122 = vadd.f32 %v1099, %v441
    %v1124 = vrot.slane %v1122, 5
    %v1126 = vmul.f32 %v1111, %v1124
    %v1127 = vadd.f32 %v390, %v1126
    %v1128 = vtanh.pop %v1127
    %v1129 = vsub.f32 1.0, %v1121
    %v1130 = vmul.f32 %v1129, %v1128
    %v1131 = vrot.slane %v957, 7
    %v1133 = vmul.f32 %v1121, %v1131
    %v1134 = vadd.f32 %v1130, %v1133
    %v1136 = vrot.slane %v1134, 3
    %1138 = vmatprep.subr.mxu0 %v439
    %1139 = vmatpush1.msra.mxu0 %v438
    %1140 = vmatprep.subr.mxu0 %v436
    %1141 = vmatpush1.msra.mxu0 %v435
    %1142 = vmatprep.subr.mxu0 %v433
    %1143 = vmatpush1.msra.mxu0 %v432
    %1144 = vmatprep.subr.mxu0 %v430
    %1145 = vmatpush1.msra.mxu0 %v429
    %1146 = vmatprep.subr.mxu0 %v427
    %1147 = vmatpush1.msra.mxu0 %v426
    %1148 = vmatprep.subr.mxu0 %v424
    %1149 = vmatpush1.msra.mxu0 %v423
    %1150 = vmatprep.subr.mxu0 %v421
    %1151 = vmatpush1.msra.mxu0 %v420
    %1152 = vmatprep.subr.mxu0 %v418
    %1153 = vmatpush1.msra.mxu0 %v417
    %1154 = vmatprep.subr.mxu0 %v415
    %1155 = vmatpush1.msra.mxu0 %v414
    %1156 = vmatprep.subr.mxu0 %v412
    %1157 = vmatpush1.msra.mxu0 %v411
    %1158 = vmatprep.subr.mxu0 %v409
    %1159 = vmatpush1.msra.mxu0 %v408
    %1160 = vmatprep.subr.mxu0 %v406
    %1161 = vmatpush1.msra.mxu0 %v405
    %1162 = vmatprep.subr.mxu0 %v403
    %1163 = vmatpush1.msra.mxu0 %v402
    %1164 = vmatprep.subr.mxu0 %v400
    %1165 = vmatpush1.msra.mxu0 %v399
    %1166 = vmatprep.subr.mxu0 %v397
    %1167 = vmatpush1.msra.mxu0 %v396
    %1168 = vmatprep.subr.mxu0 %v394
    %1169 = vmatpush1.msra.mxu0 %v393
    %1170 = vmatprep.subr.mxu0 0.0
    %1171 = vmatpush2.msra.mxu0 0.0
    %1172 = vmatprep.subr.mxu0 0.0
    %1173 = vmatpush2.msra.mxu0 0.0
    %1174 = vmatprep.subr.mxu0 0.0
    %1175 = vmatpush2.msra.mxu0 0.0
    %1176 = vmatprep.subr.mxu0 0.0
    %1177 = vmatpush2.msra.mxu0 0.0
    %1178 = vmatprep.subr.mxu0 0.0
    %1179 = vmatpush2.msra.mxu0 0.0
    %1180 = vmatprep.subr.mxu0 0.0
    %1181 = vmatpush2.msra.mxu0 0.0
    %1182 = vmatprep.subr.mxu0 0.0
    %1183 = vmatpush2.msra.mxu0 0.0
    %1184 = vmatprep.subr.mxu0 0.0
    %1185 = vmatpush2.msra.mxu0 0.0
    %1186 = vmatprep.subr.mxu0 0.0
    %1187 = vmatpush2.msra.mxu0 0.0
    %1188 = vmatprep.subr.mxu0 0.0
    %1189 = vmatpush2.msra.mxu0 0.0
    %1190 = vmatprep.subr.mxu0 0.0
    %1191 = vmatpush2.msra.mxu0 0.0
    %1192 = vmatprep.subr.mxu0 0.0
    %1193 = vmatpush2.msra.mxu0 0.0
    %1194 = vmatprep.subr.mxu0 0.0
    %1195 = vmatpush2.msra.mxu0 0.0
    %1196 = vmatprep.subr.mxu0 0.0
    %1197 = vmatpush2.msra.mxu0 0.0
    %1198 = vmatprep.subr.mxu0 0.0
    %1199 = vmatpush2.msra.mxu0 0.0
    %1200 = vmatprep.subr.mxu0 0.0
    %1201 = vmatpush2.msra.mxu0 0.0
    %1202 = vmatprep.mubr.f32.mxu0 0.0
    %1203 = vmatmul.mubr.f32.gmra.mxu0 %v1136
    %v1204 = vpop.f32.mrf.mxu0
    %v1205 = vadd.f32 0.0, %v1204
    %v1206 = vpop.f32.mrf.mxu0
    %v1207 = vadd.f32 0.0, %v1206
    %1208 = vdwg.mxu0
    %1209 = vmatprep.subr.mxu0 0.0
    %1210 = vmatpush1.msra.mxu0 %v440
    %1211 = vmatprep.subr.mxu0 0.0
    %1212 = vmatpush1.msra.mxu0 %v437
    %1213 = vmatprep.subr.mxu0 0.0
    %1214 = vmatpush1.msra.mxu0 %v434
    %1215 = vmatprep.subr.mxu0 0.0
    %1216 = vmatpush1.msra.mxu0 %v431
    %1217 = vmatprep.subr.mxu0 0.0
    %1218 = vmatpush1.msra.mxu0 %v428
    %1219 = vmatprep.subr.mxu0 0.0
    %1220 = vmatpush1.msra.mxu0 %v425
    %1221 = vmatprep.subr.mxu0 0.0
    %1222 = vmatpush1.msra.mxu0 %v422
    %1223 = vmatprep.subr.mxu0 0.0
    %1224 = vmatpush1.msra.mxu0 %v419
    %1225 = vmatprep.subr.mxu0 0.0
    %1226 = vmatpush1.msra.mxu0 %v416
    %1227 = vmatprep.subr.mxu0 0.0
    %1228 = vmatpush1.msra.mxu0 %v413
    %1229 = vmatprep.subr.mxu0 0.0
    %1230 = vmatpush1.msra.mxu0 %v410
    %1231 = vmatprep.subr.mxu0 0.0
    %1232 = vmatpush1.msra.mxu0 %v407
    %1233 = vmatprep.subr.mxu0 0.0
    %1234 = vmatpush1.msra.mxu0 %v404
    %1235 = vmatprep.subr.mxu0 0.0
    %1236 = vmatpush1.msra.mxu0 %v401
    %1237 = vmatprep.subr.mxu0 0.0
    %1238 = vmatpush1.msra.mxu0 %v398
    %1239 = vmatprep.subr.mxu0 0.0
    %1240 = vmatpush1.msra.mxu0 %v395
    %1241 = vmatprep.subr.mxu0 0.0
    %1242 = vmatpush2.msra.mxu0 0.0
    %1243 = vmatprep.subr.mxu0 0.0
    %1244 = vmatpush2.msra.mxu0 0.0
    %1245 = vmatprep.subr.mxu0 0.0
    %1246 = vmatpush2.msra.mxu0 0.0
    %1247 = vmatprep.subr.mxu0 0.0
    %1248 = vmatpush2.msra.mxu0 0.0
    %1249 = vmatprep.subr.mxu0 0.0
    %1250 = vmatpush2.msra.mxu0 0.0
    %1251 = vmatprep.subr.mxu0 0.0
    %1252 = vmatpush2.msra.mxu0 0.0
    %1253 = vmatprep.subr.mxu0 0.0
    %1254 = vmatpush2.msra.mxu0 0.0
    %1255 = vmatprep.subr.mxu0 0.0
    %1256 = vmatpush2.msra.mxu0 0.0
    %1257 = vmatprep.subr.mxu0 0.0
    %1258 = vmatpush2.msra.mxu0 0.0
    %1259 = vmatprep.subr.mxu0 0.0
    %1260 = vmatpush2.msra.mxu0 0.0
    %1261 = vmatprep.subr.mxu0 0.0
    %1262 = vmatpush2.msra.mxu0 0.0
    %1263 = vmatprep.subr.mxu0 0.0
    %1264 = vmatpush2.msra.mxu0 0.0
    %1265 = vmatprep.subr.mxu0 0.0
    %1266 = vmatpush2.msra.mxu0 0.0
    %1267 = vmatprep.subr.mxu0 0.0
    %1268 = vmatpush2.msra.mxu0 0.0
    %1269 = vmatprep.subr.mxu0 0.0
    %1270 = vmatpush2.msra.mxu0 0.0
    %1271 = vmatprep.subr.mxu0 0.0
    %1272 = vmatpush2.msra.mxu0 0.0
    %1273 = vmatprep.mubr.f32.mxu0 0.0
    %1274 = vmatmul.mubr.f32.gmra.mxu0 %v1136
    %v1275 = vpop.f32.mrf.mxu0
    %v1276 = vadd.f32 0.0, %v1275
    %v1277 = vpop.f32.mrf.mxu0
    %1278 = vdwg.mxu0
    %v1280 = vrot.slane %v1205, 4
    %v1282 = vadd.f32 %v319, %v1280
    %v1283 = vxor.u32 %v1282, 2147483648
    %v1284 = vmul.f32 %v1283, 1.442695
    %v1285 = vpow.pop %v1284
    %v1286 = vadd.f32 %v1285, 1.0
    %v1287 = vrcp.pop %v1286
    %v1288 = vmul.f32 1.0, %v1287
    %v1290 = vrot.slane %v1207, 4
    %v1292 = vadd.f32 %v321, %v1290
    %v1293 = vxor.u32 %v1292, 2147483648
    %v1294 = vmul.f32 %v1293, 1.442695
    %v1295 = vpow.pop %v1294
    %v1296 = vadd.f32 %v1295, 1.0
    %v1297 = vrcp.pop %v1296
    %v1298 = vmul.f32 1.0, %v1297
    %v1299 = vadd.f32 %v1276, %v441
    %v1301 = vrot.slane %v1299, 4
    %v1303 = vmul.f32 %v1288, %v1301
    %v1304 = vadd.f32 %v390, %v1303
    %v1305 = vtanh.pop %v1304
    %v1306 = vsub.f32 1.0, %v1298
    %v1307 = vmul.f32 %v1306, %v1305
    %v1308 = vrot.slane %v1134, 7
    %v1310 = vmul.f32 %v1298, %v1308
    %v1311 = vadd.f32 %v1307, %v1310
    %v1313 = vrot.slane %v1311, 4
    %1315 = vmatprep.subr.mxu0 %v439
    %1316 = vmatpush1.msra.mxu0 %v438
    %1317 = vmatprep.subr.mxu0 %v436
    %1318 = vmatpush1.msra.mxu0 %v435
    %1319 = vmatprep.subr.mxu0 %v433
    %1320 = vmatpush1.msra.mxu0 %v432
    %1321 = vmatprep.subr.mxu0 %v430
    %1322 = vmatpush1.msra.mxu0 %v429
    %1323 = vmatprep.subr.mxu0 %v427
    %1324 = vmatpush1.msra.mxu0 %v426
    %1325 = vmatprep.subr.mxu0 %v424
    %1326 = vmatpush1.msra.mxu0 %v423
    %1327 = vmatprep.subr.mxu0 %v421
    %1328 = vmatpush1.msra.mxu0 %v420
    %1329 = vmatprep.subr.mxu0 %v418
    %1330 = vmatpush1.msra.mxu0 %v417
    %1331 = vmatprep.subr.mxu0 %v415
    %1332 = vmatpush1.msra.mxu0 %v414
    %1333 = vmatprep.subr.mxu0 %v412
    %1334 = vmatpush1.msra.mxu0 %v411
    %1335 = vmatprep.subr.mxu0 %v409
    %1336 = vmatpush1.msra.mxu0 %v408
    %1337 = vmatprep.subr.mxu0 %v406
    %1338 = vmatpush1.msra.mxu0 %v405
    %1339 = vmatprep.subr.mxu0 %v403
    %1340 = vmatpush1.msra.mxu0 %v402
    %1341 = vmatprep.subr.mxu0 %v400
    %1342 = vmatpush1.msra.mxu0 %v399
    %1343 = vmatprep.subr.mxu0 %v397
    %1344 = vmatpush1.msra.mxu0 %v396
    %1345 = vmatprep.subr.mxu0 %v394
    %1346 = vmatpush1.msra.mxu0 %v393
    %1347 = vmatprep.subr.mxu0 0.0
    %1348 = vmatpush2.msra.mxu0 0.0
    %1349 = vmatprep.subr.mxu0 0.0
    %1350 = vmatpush2.msra.mxu0 0.0
    %1351 = vmatprep.subr.mxu0 0.0
    %1352 = vmatpush2.msra.mxu0 0.0
    %1353 = vmatprep.subr.mxu0 0.0
    %1354 = vmatpush2.msra.mxu0 0.0
    %1355 = vmatprep.subr.mxu0 0.0
    %1356 = vmatpush2.msra.mxu0 0.0
    %1357 = vmatprep.subr.mxu0 0.0
    %1358 = vmatpush2.msra.mxu0 0.0
    %1359 = vmatprep.subr.mxu0 0.0
    %1360 = vmatpush2.msra.mxu0 0.0
    %1361 = vmatprep.subr.mxu0 0.0
    %1362 = vmatpush2.msra.mxu0 0.0
    %1363 = vmatprep.subr.mxu0 0.0
    %1364 = vmatpush2.msra.mxu0 0.0
    %1365 = vmatprep.subr.mxu0 0.0
    %1366 = vmatpush2.msra.mxu0 0.0
    %1367 = vmatprep.subr.mxu0 0.0
    %1368 = vmatpush2.msra.mxu0 0.0
    %1369 = vmatprep.subr.mxu0 0.0
    %1370 = vmatpush2.msra.mxu0 0.0
    %1371 = vmatprep.subr.mxu0 0.0
    %1372 = vmatpush2.msra.mxu0 0.0
    %1373 = vmatprep.subr.mxu0 0.0
    %1374 = vmatpush2.msra.mxu0 0.0
    %1375 = vmatprep.subr.mxu0 0.0
    %1376 = vmatpush2.msra.mxu0 0.0
    %1377 = vmatprep.subr.mxu0 0.0
    %1378 = vmatpush2.msra.mxu0 0.0
    %1379 = vmatprep.mubr.f32.mxu0 0.0
    %1380 = vmatmul.mubr.f32.gmra.mxu0 %v1313
    %v1381 = vpop.f32.mrf.mxu0
    %v1382 = vadd.f32 0.0, %v1381
    %v1383 = vpop.f32.mrf.mxu0
    %v1384 = vadd.f32 0.0, %v1383
    %1385 = vdwg.mxu0
    %1386 = vmatprep.subr.mxu0 0.0
    %1387 = vmatpush1.msra.mxu0 %v440
    %1388 = vmatprep.subr.mxu0 0.0
    %1389 = vmatpush1.msra.mxu0 %v437
    %1390 = vmatprep.subr.mxu0 0.0
    %1391 = vmatpush1.msra.mxu0 %v434
    %1392 = vmatprep.subr.mxu0 0.0
    %1393 = vmatpush1.msra.mxu0 %v431
    %1394 = vmatprep.subr.mxu0 0.0
    %1395 = vmatpush1.msra.mxu0 %v428
    %1396 = vmatprep.subr.mxu0 0.0
    %1397 = vmatpush1.msra.mxu0 %v425
    %1398 = vmatprep.subr.mxu0 0.0
    %1399 = vmatpush1.msra.mxu0 %v422
    %1400 = vmatprep.subr.mxu0 0.0
    %1401 = vmatpush1.msra.mxu0 %v419
    %1402 = vmatprep.subr.mxu0 0.0
    %1403 = vmatpush1.msra.mxu0 %v416
    %1404 = vmatprep.subr.mxu0 0.0
    %1405 = vmatpush1.msra.mxu0 %v413
    %1406 = vmatprep.subr.mxu0 0.0
    %1407 = vmatpush1.msra.mxu0 %v410
    %1408 = vmatprep.subr.mxu0 0.0
    %1409 = vmatpush1.msra.mxu0 %v407
    %1410 = vmatprep.subr.mxu0 0.0
    %1411 = vmatpush1.msra.mxu0 %v404
    %1412 = vmatprep.subr.mxu0 0.0
    %1413 = vmatpush1.msra.mxu0 %v401
    %1414 = vmatprep.subr.mxu0 0.0
    %1415 = vmatpush1.msra.mxu0 %v398
    %1416 = vmatprep.subr.mxu0 0.0
    %1417 = vmatpush1.msra.mxu0 %v395
    %1418 = vmatprep.subr.mxu0 0.0
    %1419 = vmatpush2.msra.mxu0 0.0
    %1420 = vmatprep.subr.mxu0 0.0
    %1421 = vmatpush2.msra.mxu0 0.0
    %1422 = vmatprep.subr.mxu0 0.0
    %1423 = vmatpush2.msra.mxu0 0.0
    %1424 = vmatprep.subr.mxu0 0.0
    %1425 = vmatpush2.msra.mxu0 0.0
    %1426 = vmatprep.subr.mxu0 0.0
    %1427 = vmatpush2.msra.mxu0 0.0
    %1428 = vmatprep.subr.mxu0 0.0
    %1429 = vmatpush2.msra.mxu0 0.0
    %1430 = vmatprep.subr.mxu0 0.0
    %1431 = vmatpush2.msra.mxu0 0.0
    %1432 = vmatprep.subr.mxu0 0.0
    %1433 = vmatpush2.msra.mxu0 0.0
    %1434 = vmatprep.subr.mxu0 0.0
    %1435 = vmatpush2.msra.mxu0 0.0
    %1436 = vmatprep.subr.mxu0 0.0
    %1437 = vmatpush2.msra.mxu0 0.0
    %1438 = vmatprep.subr.mxu0 0.0
    %1439 = vmatpush2.msra.mxu0 0.0
    %1440 = vmatprep.subr.mxu0 0.0
    %1441 = vmatpush2.msra.mxu0 0.0
    %1442 = vmatprep.subr.mxu0 0.0
    %1443 = vmatpush2.msra.mxu0 0.0
    %1444 = vmatprep.subr.mxu0 0.0
    %1445 = vmatpush2.msra.mxu0 0.0
    %1446 = vmatprep.subr.mxu0 0.0
    %1447 = vmatpush2.msra.mxu0 0.0
    %1448 = vmatprep.subr.mxu0 0.0
    %1449 = vmatpush2.msra.mxu0 0.0
    %1450 = vmatprep.mubr.f32.mxu0 0.0
    %1451 = vmatmul.mubr.f32.gmra.mxu0 %v1313
    %v1452 = vpop.f32.mrf.mxu0
    %v1453 = vadd.f32 0.0, %v1452
    %v1454 = vpop.f32.mrf.mxu0
    %1455 = vdwg.mxu0
    %v1457 = vrot.slane %v1382, 3
    %v1459 = vadd.f32 %v319, %v1457
    %v1460 = vxor.u32 %v1459, 2147483648
    %v1461 = vmul.f32 %v1460, 1.442695
    %v1462 = vpow.pop %v1461
    %v1463 = vadd.f32 %v1462, 1.0
    %v1464 = vrcp.pop %v1463
    %v1465 = vmul.f32 1.0, %v1464
    %v1467 = vrot.slane %v1384, 3
    %v1469 = vadd.f32 %v321, %v1467
    %v1470 = vxor.u32 %v1469, 2147483648
    %v1471 = vmul.f32 %v1470, 1.442695
    %v1472 = vpow.pop %v1471
    %v1473 = vadd.f32 %v1472, 1.0
    %v1474 = vrcp.pop %v1473
    %v1475 = vmul.f32 1.0, %v1474
    %v1476 = vadd.f32 %v1453, %v441
    %v1478 = vrot.slane %v1476, 3
    %v1480 = vmul.f32 %v1465, %v1478
    %v1481 = vadd.f32 %v390, %v1480
    %v1482 = vtanh.pop %v1481
    %v1483 = vsub.f32 1.0, %v1475
    %v1484 = vmul.f32 %v1483, %v1482
    %v1485 = vrot.slane %v1311, 7
    %v1487 = vmul.f32 %v1475, %v1485
    %v1488 = vadd.f32 %v1484, %v1487
    %v1490 = vrot.slane %v1488, 5
    %1492 = vmatprep.subr.mxu0 %v439
    %1493 = vmatpush1.msra.mxu0 %v438
    %1494 = vmatprep.subr.mxu0 %v436
    %1495 = vmatpush1.msra.mxu0 %v435
    %1496 = vmatprep.subr.mxu0 %v433
    %1497 = vmatpush1.msra.mxu0 %v432
    %1498 = vmatprep.subr.mxu0 %v430
    %1499 = vmatpush1.msra.mxu0 %v429
    %1500 = vmatprep.subr.mxu0 %v427
    %1501 = vmatpush1.msra.mxu0 %v426
    %1502 = vmatprep.subr.mxu0 %v424
    %1503 = vmatpush1.msra.mxu0 %v423
    %1504 = vmatprep.subr.mxu0 %v421
    %1505 = vmatpush1.msra.mxu0 %v420
    %1506 = vmatprep.subr.mxu0 %v418
    %1507 = vmatpush1.msra.mxu0 %v417
    %1508 = vmatprep.subr.mxu0 %v415
    %1509 = vmatpush1.msra.mxu0 %v414
    %1510 = vmatprep.subr.mxu0 %v412
    %1511 = vmatpush1.msra.mxu0 %v411
    %1512 = vmatprep.subr.mxu0 %v409
    %1513 = vmatpush1.msra.mxu0 %v408
    %1514 = vmatprep.subr.mxu0 %v406
    %1515 = vmatpush1.msra.mxu0 %v405
    %1516 = vmatprep.subr.mxu0 %v403
    %1517 = vmatpush1.msra.mxu0 %v402
    %1518 = vmatprep.subr.mxu0 %v400
    %1519 = vmatpush1.msra.mxu0 %v399
    %1520 = vmatprep.subr.mxu0 %v397
    %1521 = vmatpush1.msra.mxu0 %v396
    %1522 = vmatprep.subr.mxu0 %v394
    %1523 = vmatpush1.msra.mxu0 %v393
    %1524 = vmatprep.subr.mxu0 0.0
    %1525 = vmatpush2.msra.mxu0 0.0
    %1526 = vmatprep.subr.mxu0 0.0
    %1527 = vmatpush2.msra.mxu0 0.0
    %1528 = vmatprep.subr.mxu0 0.0
    %1529 = vmatpush2.msra.mxu0 0.0
    %1530 = vmatprep.subr.mxu0 0.0
    %1531 = vmatpush2.msra.mxu0 0.0
    %1532 = vmatprep.subr.mxu0 0.0
    %1533 = vmatpush2.msra.mxu0 0.0
    %1534 = vmatprep.subr.mxu0 0.0
    %1535 = vmatpush2.msra.mxu0 0.0
    %1536 = vmatprep.subr.mxu0 0.0
    %1537 = vmatpush2.msra.mxu0 0.0
    %1538 = vmatprep.subr.mxu0 0.0
    %1539 = vmatpush2.msra.mxu0 0.0
    %1540 = vmatprep.subr.mxu0 0.0
    %1541 = vmatpush2.msra.mxu0 0.0
    %1542 = vmatprep.subr.mxu0 0.0
    %1543 = vmatpush2.msra.mxu0 0.0
    %1544 = vmatprep.subr.mxu0 0.0
    %1545 = vmatpush2.msra.mxu0 0.0
    %1546 = vmatprep.subr.mxu0 0.0
    %1547 = vmatpush2.msra.mxu0 0.0
    %1548 = vmatprep.subr.mxu0 0.0
    %1549 = vmatpush2.msra.mxu0 0.0
    %1550 = vmatprep.subr.mxu0 0.0
    %1551 = vmatpush2.msra.mxu0 0.0
    %1552 = vmatprep.subr.mxu0 0.0
    %1553 = vmatpush2.msra.mxu0 0.0
    %1554 = vmatprep.subr.mxu0 0.0
    %1555 = vmatpush2.msra.mxu0 0.0
    %1556 = vmatprep.mubr.f32.mxu0 0.0
    %1557 = vmatmul.mubr.f32.gmra.mxu0 %v1490
    %v1558 = vpop.f32.mrf.mxu0
    %v1559 = vadd.f32 0.0, %v1558
    %v1560 = vpop.f32.mrf.mxu0
    %v1561 = vadd.f32 0.0, %v1560
    %1562 = vdwg.mxu0
    %1563 = vmatprep.subr.mxu0 0.0
    %1564 = vmatpush1.msra.mxu0 %v440
    %1565 = vmatprep.subr.mxu0 0.0
    %1566 = vmatpush1.msra.mxu0 %v437
    %1567 = vmatprep.subr.mxu0 0.0
    %1568 = vmatpush1.msra.mxu0 %v434
    %1569 = vmatprep.subr.mxu0 0.0
    %1570 = vmatpush1.msra.mxu0 %v431
    %1571 = vmatprep.subr.mxu0 0.0
    %1572 = vmatpush1.msra.mxu0 %v428
    %1573 = vmatprep.subr.mxu0 0.0
    %1574 = vmatpush1.msra.mxu0 %v425
    %1575 = vmatprep.subr.mxu0 0.0
    %1576 = vmatpush1.msra.mxu0 %v422
    %1577 = vmatprep.subr.mxu0 0.0
    %1578 = vmatpush1.msra.mxu0 %v419
    %1579 = vmatprep.subr.mxu0 0.0
    %1580 = vmatpush1.msra.mxu0 %v416
    %1581 = vmatprep.subr.mxu0 0.0
    %1582 = vmatpush1.msra.mxu0 %v413
    %1583 = vmatprep.subr.mxu0 0.0
    %1584 = vmatpush1.msra.mxu0 %v410
    %1585 = vmatprep.subr.mxu0 0.0
    %1586 = vmatpush1.msra.mxu0 %v407
    %1587 = vmatprep.subr.mxu0 0.0
    %1588 = vmatpush1.msra.mxu0 %v404
    %1589 = vmatprep.subr.mxu0 0.0
    %1590 = vmatpush1.msra.mxu0 %v401
    %1591 = vmatprep.subr.mxu0 0.0
    %1592 = vmatpush1.msra.mxu0 %v398
    %1593 = vmatprep.subr.mxu0 0.0
    %1594 = vmatpush1.msra.mxu0 %v395
    %1595 = vmatprep.subr.mxu0 0.0
    %1596 = vmatpush2.msra.mxu0 0.0
    %1597 = vmatprep.subr.mxu0 0.0
    %1598 = vmatpush2.msra.mxu0 0.0
    %1599 = vmatprep.subr.mxu0 0.0
    %1600 = vmatpush2.msra.mxu0 0.0
    %1601 = vmatprep.subr.mxu0 0.0
    %1602 = vmatpush2.msra.mxu0 0.0
    %1603 = vmatprep.subr.mxu0 0.0
    %1604 = vmatpush2.msra.mxu0 0.0
    %1605 = vmatprep.subr.mxu0 0.0
    %1606 = vmatpush2.msra.mxu0 0.0
    %1607 = vmatprep.subr.mxu0 0.0
    %1608 = vmatpush2.msra.mxu0 0.0
    %1609 = vmatprep.subr.mxu0 0.0
    %1610 = vmatpush2.msra.mxu0 0.0
    %1611 = vmatprep.subr.mxu0 0.0
    %1612 = vmatpush2.msra.mxu0 0.0
    %1613 = vmatprep.subr.mxu0 0.0
    %1614 = vmatpush2.msra.mxu0 0.0
    %1615 = vmatprep.subr.mxu0 0.0
    %1616 = vmatpush2.msra.mxu0 0.0
    %1617 = vmatprep.subr.mxu0 0.0
    %1618 = vmatpush2.msra.mxu0 0.0
    %1619 = vmatprep.subr.mxu0 0.0
    %1620 = vmatpush2.msra.mxu0 0.0
    %1621 = vmatprep.subr.mxu0 0.0
    %1622 = vmatpush2.msra.mxu0 0.0
    %1623 = vmatprep.subr.mxu0 0.0
    %1624 = vmatpush2.msra.mxu0 0.0
    %1625 = vmatprep.subr.mxu0 0.0
    %1626 = vmatpush2.msra.mxu0 0.0
    %1627 = vmatprep.mubr.f32.mxu0 0.0
    %1628 = vmatmul.mubr.f32.gmra.mxu0 %v1490
    %v1629 = vpop.f32.mrf.mxu0
    %v1630 = vadd.f32 0.0, %v1629
    %v1631 = vpop.f32.mrf.mxu0
    %1632 = vdwg.mxu0
    %v1634 = vrot.slane %v1559, 2
    %v1636 = vadd.f32 %v319, %v1634
    %v1637 = vxor.u32 %v1636, 2147483648
    %v1638 = vmul.f32 %v1637, 1.442695
    %v1639 = vpow.pop %v1638
    %v1640 = vadd.f32 %v1639, 1.0
    %v1641 = vrcp.pop %v1640
    %v1642 = vmul.f32 1.0, %v1641
    %v1644 = vrot.slane %v1561, 2
    %v1646 = vadd.f32 %v321, %v1644
    %v1647 = vxor.u32 %v1646, 2147483648
    %v1648 = vmul.f32 %v1647, 1.442695
    %v1649 = vpow.pop %v1648
    %v1650 = vadd.f32 %v1649, 1.0
    %v1651 = vrcp.pop %v1650
    %v1652 = vmul.f32 1.0, %v1651
    %v1653 = vadd.f32 %v1630, %v441
    %v1655 = vrot.slane %v1653, 2
    %v1657 = vmul.f32 %v1642, %v1655
    %v1658 = vadd.f32 %v390, %v1657
    %v1659 = vtanh.pop %v1658
    %v1660 = vsub.f32 1.0, %v1652
    %v1661 = vmul.f32 %v1660, %v1659
    %v1662 = vrot.slane %v1488, 7
    %v1664 = vmul.f32 %v1652, %v1662
    %v1665 = vadd.f32 %v1661, %v1664
    %v1667 = vrot.slane %v1665, 6
    %1669 = vmatprep.subr.mxu0 %v439
    %1670 = vmatpush1.msra.mxu0 %v438
    %1671 = vmatprep.subr.mxu0 %v436
    %1672 = vmatpush1.msra.mxu0 %v435
    %1673 = vmatprep.subr.mxu0 %v433
    %1674 = vmatpush1.msra.mxu0 %v432
    %1675 = vmatprep.subr.mxu0 %v430
    %1676 = vmatpush1.msra.mxu0 %v429
    %1677 = vmatprep.subr.mxu0 %v427
    %1678 = vmatpush1.msra.mxu0 %v426
    %1679 = vmatprep.subr.mxu0 %v424
    %1680 = vmatpush1.msra.mxu0 %v423
    %1681 = vmatprep.subr.mxu0 %v421
    %1682 = vmatpush1.msra.mxu0 %v420
    %1683 = vmatprep.subr.mxu0 %v418
    %1684 = vmatpush1.msra.mxu0 %v417
    %1685 = vmatprep.subr.mxu0 %v415
    %1686 = vmatpush1.msra.mxu0 %v414
    %1687 = vmatprep.subr.mxu0 %v412
    %1688 = vmatpush1.msra.mxu0 %v411
    %1689 = vmatprep.subr.mxu0 %v409
    %1690 = vmatpush1.msra.mxu0 %v408
    %1691 = vmatprep.subr.mxu0 %v406
    %1692 = vmatpush1.msra.mxu0 %v405
    %1693 = vmatprep.subr.mxu0 %v403
    %1694 = vmatpush1.msra.mxu0 %v402
    %1695 = vmatprep.subr.mxu0 %v400
    %1696 = vmatpush1.msra.mxu0 %v399
    %1697 = vmatprep.subr.mxu0 %v397
    %1698 = vmatpush1.msra.mxu0 %v396
    %1699 = vmatprep.subr.mxu0 %v394
    %1700 = vmatpush1.msra.mxu0 %v393
    %1701 = vmatprep.subr.mxu0 0.0
    %1702 = vmatpush2.msra.mxu0 0.0
    %1703 = vmatprep.subr.mxu0 0.0
    %1704 = vmatpush2.msra.mxu0 0.0
    %1705 = vmatprep.subr.mxu0 0.0
    %1706 = vmatpush2.msra.mxu0 0.0
    %1707 = vmatprep.subr.mxu0 0.0
    %1708 = vmatpush2.msra.mxu0 0.0
    %1709 = vmatprep.subr.mxu0 0.0
    %1710 = vmatpush2.msra.mxu0 0.0
    %1711 = vmatprep.subr.mxu0 0.0
    %1712 = vmatpush2.msra.mxu0 0.0
    %1713 = vmatprep.subr.mxu0 0.0
    %1714 = vmatpush2.msra.mxu0 0.0
    %1715 = vmatprep.subr.mxu0 0.0
    %1716 = vmatpush2.msra.mxu0 0.0
    %1717 = vmatprep.subr.mxu0 0.0
    %1718 = vmatpush2.msra.mxu0 0.0
    %1719 = vmatprep.subr.mxu0 0.0
    %1720 = vmatpush2.msra.mxu0 0.0
    %1721 = vmatprep.subr.mxu0 0.0
    %1722 = vmatpush2.msra.mxu0 0.0
    %1723 = vmatprep.subr.mxu0 0.0
    %1724 = vmatpush2.msra.mxu0 0.0
    %1725 = vmatprep.subr.mxu0 0.0
    %1726 = vmatpush2.msra.mxu0 0.0
    %1727 = vmatprep.subr.mxu0 0.0
    %1728 = vmatpush2.msra.mxu0 0.0
    %1729 = vmatprep.subr.mxu0 0.0
    %1730 = vmatpush2.msra.mxu0 0.0
    %1731 = vmatprep.subr.mxu0 0.0
    %1732 = vmatpush2.msra.mxu0 0.0
    %1733 = vmatprep.mubr.f32.mxu0 0.0
    %1734 = vmatmul.mubr.f32.gmra.mxu0 %v1667
    %v1735 = vpop.f32.mrf.mxu0
    %v1736 = vadd.f32 0.0, %v1735
    %v1737 = vpop.f32.mrf.mxu0
    %v1738 = vadd.f32 0.0, %v1737
    %1739 = vdwg.mxu0
    %1740 = vmatprep.subr.mxu0 0.0
    %1741 = vmatpush1.msra.mxu0 %v440
    %1742 = vmatprep.subr.mxu0 0.0
    %1743 = vmatpush1.msra.mxu0 %v437
    %1744 = vmatprep.subr.mxu0 0.0
    %1745 = vmatpush1.msra.mxu0 %v434
    %1746 = vmatprep.subr.mxu0 0.0
    %1747 = vmatpush1.msra.mxu0 %v431
    %1748 = vmatprep.subr.mxu0 0.0
    %1749 = vmatpush1.msra.mxu0 %v428
    %1750 = vmatprep.subr.mxu0 0.0
    %1751 = vmatpush1.msra.mxu0 %v425
    %1752 = vmatprep.subr.mxu0 0.0
    %1753 = vmatpush1.msra.mxu0 %v422
    %1754 = vmatprep.subr.mxu0 0.0
    %1755 = vmatpush1.msra.mxu0 %v419
    %1756 = vmatprep.subr.mxu0 0.0
    %1757 = vmatpush1.msra.mxu0 %v416
    %1758 = vmatprep.subr.mxu0 0.0
    %1759 = vmatpush1.msra.mxu0 %v413
    %1760 = vmatprep.subr.mxu0 0.0
    %1761 = vmatpush1.msra.mxu0 %v410
    %1762 = vmatprep.subr.mxu0 0.0
    %1763 = vmatpush1.msra.mxu0 %v407
    %1764 = vmatprep.subr.mxu0 0.0
    %1765 = vmatpush1.msra.mxu0 %v404
    %1766 = vmatprep.subr.mxu0 0.0
    %1767 = vmatpush1.msra.mxu0 %v401
    %1768 = vmatprep.subr.mxu0 0.0
    %1769 = vmatpush1.msra.mxu0 %v398
    %1770 = vmatprep.subr.mxu0 0.0
    %1771 = vmatpush1.msra.mxu0 %v395
    %1772 = vmatprep.subr.mxu0 0.0
    %1773 = vmatpush2.msra.mxu0 0.0
    %1774 = vmatprep.subr.mxu0 0.0
    %1775 = vmatpush2.msra.mxu0 0.0
    %1776 = vmatprep.subr.mxu0 0.0
    %1777 = vmatpush2.msra.mxu0 0.0
    %1778 = vmatprep.subr.mxu0 0.0
    %1779 = vmatpush2.msra.mxu0 0.0
    %1780 = vmatprep.subr.mxu0 0.0
    %1781 = vmatpush2.msra.mxu0 0.0
    %1782 = vmatprep.subr.mxu0 0.0
    %1783 = vmatpush2.msra.mxu0 0.0
    %1784 = vmatprep.subr.mxu0 0.0
    %1785 = vmatpush2.msra.mxu0 0.0
    %1786 = vmatprep.subr.mxu0 0.0
    %1787 = vmatpush2.msra.mxu0 0.0
    %1788 = vmatprep.subr.mxu0 0.0
    %1789 = vmatpush2.msra.mxu0 0.0
    %1790 = vmatprep.subr.mxu0 0.0
    %1791 = vmatpush2.msra.mxu0 0.0
    %1792 = vmatprep.subr.mxu0 0.0
    %1793 = vmatpush2.msra.mxu0 0.0
    %1794 = vmatprep.subr.mxu0 0.0
    %1795 = vmatpush2.msra.mxu0 0.0
    %1796 = vmatprep.subr.mxu0 0.0
    %1797 = vmatpush2.msra.mxu0 0.0
    %1798 = vmatprep.subr.mxu0 0.0
    %1799 = vmatpush2.msra.mxu0 0.0
    %1800 = vmatprep.subr.mxu0 0.0
    %1801 = vmatpush2.msra.mxu0 0.0
    %1802 = vmatprep.subr.mxu0 0.0
    %1803 = vmatpush2.msra.mxu0 0.0
    %1804 = vmatprep.mubr.f32.mxu0 0.0
    %1805 = vmatmul.mubr.f32.gmra.mxu0 %v1667
    %v1806 = vpop.f32.mrf.mxu0
    %v1807 = vadd.f32 0.0, %v1806
    %v1808 = vpop.f32.mrf.mxu0
    %1809 = vdwg.mxu0
    %v1811 = vrot.slane %v1736, 1
    %v1813 = vadd.f32 %v319, %v1811
    %v1814 = vxor.u32 %v1813, 2147483648
    %v1815 = vmul.f32 %v1814, 1.442695
    %v1816 = vpow.pop %v1815
    %v1817 = vadd.f32 %v1816, 1.0
    %v1818 = vrcp.pop %v1817
    %v1819 = vmul.f32 1.0, %v1818
    %v1821 = vrot.slane %v1738, 1
    %v1823 = vadd.f32 %v321, %v1821
    %v1824 = vxor.u32 %v1823, 2147483648
    %v1825 = vmul.f32 %v1824, 1.442695
    %v1826 = vpow.pop %v1825
    %v1827 = vadd.f32 %v1826, 1.0
    %v1828 = vrcp.pop %v1827
    %v1829 = vmul.f32 1.0, %v1828
    %v1830 = vadd.f32 %v1807, %v441
    %v1832 = vrot.slane %v1830, 1
    %v1834 = vmul.f32 %v1819, %v1832
    %v1835 = vadd.f32 %v390, %v1834
    %v1836 = vtanh.pop %v1835
    %v1837 = vsub.f32 1.0, %v1829
    %v1838 = vmul.f32 %v1837, %v1836
    %v1839 = vrot.slane %v1665, 7
    %v1841 = vmul.f32 %v1829, %v1839
    %v1842 = vadd.f32 %v1838, %v1841
    %1843 = vst [vmem:[#allocation11 - $0x7] sm:$0x80] %v1842
    %vm1844 = vcmask 1040384
    %v1845 = vsel %vm1844, %v605, %v780
    %vm1846 = vcmask 1041408
    %v1847 = vsel %vm1846, %v1845, %v957
    %vm1848 = vcmask 1042432
    %v1849 = vsel %vm1848, %v1847, %v1134
    %vm1850 = vcmask 1043456
    %v1851 = vsel %vm1850, %v1849, %v1311
    %vm1852 = vcmask 1044480
    %v1853 = vsel %vm1852, %v1851, %v1488
    %vm1854 = vcmask 1045504
    %v1855 = vsel %vm1854, %v1853, %v1665
    %vm1856 = vcmask 1046528
    %v1857 = vsel %vm1856, %v1855, %v1842
    %v1858 = vld [vmem:[#allocation8] sm:$0xff]
    %v1859 = vld [vmem:[#allocation8 + $0x8] sm:$0xff]
    %v1860 = vld [vmem:[#allocation8 + $0x10] sm:$0xff]
    %v1861 = vld [vmem:[#allocation8 + $0x18] sm:$0xff]
    %v1862 = vld [vmem:[#allocation8 + $0x20] sm:$0xff]
    %v1863 = vld [vmem:[#allocation8 + $0x28] sm:$0xff]
    %v1864 = vld [vmem:[#allocation8 + $0x30] sm:$0xff]
    %v1865 = vld [vmem:[#allocation8 + $0x38] sm:$0xff]
    %v1866 = vld [vmem:[#allocation8 + $0x40] sm:$0xff]
    %v1867 = vld [vmem:[#allocation8 + $0x48] sm:$0xff]
    %v1868 = vld [vmem:[#allocation8 + $0x50] sm:$0xff]
    %v1869 = vld [vmem:[#allocation8 + $0x58] sm:$0xff]
    %v1870 = vld [vmem:[#allocation8 + $0x60] sm:$0xff]
    %v1871 = vld [vmem:[#allocation8 + $0x68] sm:$0xff]
    %v1872 = vld [vmem:[#allocation8 + $0x70] sm:$0xff]
    %v1873 = vld [vmem:[#allocation8 + $0x78] sm:$0xff]
    %v1874 = vld [vmem:[%s8] sm:$0x1]
    %v1876 = vlaneseq
    %v1877 = vshrl.u32 %v1876, 7
    %v1878 = vsub.s32 0, %v1877
    %v1879 = vrot.slane %v1874, %v1878
    %1881 = vmatprep.subr.mxu0 0.0
    %1882 = vmatpush1.msra.mxu0 %v1873
    %1883 = vmatprep.subr.mxu0 0.0
    %1884 = vmatpush1.msra.mxu0 %v1872
    %1885 = vmatprep.subr.mxu0 0.0
    %1886 = vmatpush1.msra.mxu0 %v1871
    %1887 = vmatprep.subr.mxu0 0.0
    %1888 = vmatpush1.msra.mxu0 %v1870
    %1889 = vmatprep.subr.mxu0 0.0
    %1890 = vmatpush1.msra.mxu0 %v1869
    %1891 = vmatprep.subr.mxu0 0.0
    %1892 = vmatpush1.msra.mxu0 %v1868
    %1893 = vmatprep.subr.mxu0 0.0
    %1894 = vmatpush1.msra.mxu0 %v1867
    %1895 = vmatprep.subr.mxu0 0.0
    %1896 = vmatpush1.msra.mxu0 %v1866
    %1897 = vmatprep.subr.mxu0 0.0
    %1898 = vmatpush1.msra.mxu0 %v1865
    %1899 = vmatprep.subr.mxu0 0.0
    %1900 = vmatpush1.msra.mxu0 %v1864
    %1901 = vmatprep.subr.mxu0 0.0
    %1902 = vmatpush1.msra.mxu0 %v1863
    %1903 = vmatprep.subr.mxu0 0.0
    %1904 = vmatpush1.msra.mxu0 %v1862
    %1905 = vmatprep.subr.mxu0 0.0
    %1906 = vmatpush1.msra.mxu0 %v1861
    %1907 = vmatprep.subr.mxu0 0.0
    %1908 = vmatpush1.msra.mxu0 %v1860
    %1909 = vmatprep.subr.mxu0 0.0
    %1910 = vmatpush1.msra.mxu0 %v1859
    %1911 = vmatprep.subr.mxu0 0.0
    %1912 = vmatpush1.msra.mxu0 %v1858
    %1913 = vmatprep.subr.mxu0 0.0
    %1914 = vmatpush2.msra.mxu0 0.0
    %1915 = vmatprep.subr.mxu0 0.0
    %1916 = vmatpush2.msra.mxu0 0.0
    %1917 = vmatprep.subr.mxu0 0.0
    %1918 = vmatpush2.msra.mxu0 0.0
    %1919 = vmatprep.subr.mxu0 0.0
    %1920 = vmatpush2.msra.mxu0 0.0
    %1921 = vmatprep.subr.mxu0 0.0
    %1922 = vmatpush2.msra.mxu0 0.0
    %1923 = vmatprep.subr.mxu0 0.0
    %1924 = vmatpush2.msra.mxu0 0.0
    %1925 = vmatprep.subr.mxu0 0.0
    %1926 = vmatpush2.msra.mxu0 0.0
    %1927 = vmatprep.subr.mxu0 0.0
    %1928 = vmatpush2.msra.mxu0 0.0
    %1929 = vmatprep.subr.mxu0 0.0
    %1930 = vmatpush2.msra.mxu0 0.0
    %1931 = vmatprep.subr.mxu0 0.0
    %1932 = vmatpush2.msra.mxu0 0.0
    %1933 = vmatprep.subr.mxu0 0.0
    %1934 = vmatpush2.msra.mxu0 0.0
    %1935 = vmatprep.subr.mxu0 0.0
    %1936 = vmatpush2.msra.mxu0 0.0
    %1937 = vmatprep.subr.mxu0 0.0
    %1938 = vmatpush2.msra.mxu0 0.0
    %1939 = vmatprep.subr.mxu0 0.0
    %1940 = vmatpush2.msra.mxu0 0.0
    %1941 = vmatprep.subr.mxu0 0.0
    %1942 = vmatpush2.msra.mxu0 0.0
    %1943 = vmatprep.subr.mxu0 0.0
    %1944 = vmatpush2.msra.mxu0 0.0
    %1945 = vmatprep.mubr.f32.mxu0 0.0
    %1946 = vmatmul.mubr.f32.gmra.mxu0 %v1857
    %v1947 = vpop.f32.mrf.mxu0
    %v1948 = vadd.f32 %v1879, %v1947
    %v1949 = vpop.f32.mrf.mxu0
    %1950 = vdwg.mxu0
    %1951 = vmax.xlane.f32.xlu0 %v1948
    %v1952 = vpop.xlane.xlu0 %1951
    %v1953 = vsub.f32 %v1948, %v1952
    %v1954 = vmul.f32 %v1953, 1.442695
    %v1955 = vpow.pop %v1954
    %1956 = vadd.xlane.f32.xlu0 %v1955
    %v1957 = vpop.xlane.xlu0 %1956
    %v1958 = vlog2.pop %v1957
    %v1959 = vmul.f32 %v1958, 0.6931472
    %v1960 = vadd.f32 %v1959, %v1952
    %v1961 = vsub.f32 %v1948, %v1960
    %1962 = vst [vmem:[#allocation10] sm:$0xff] %v1961
    // Predicated region
    $region54: #{tpu_custom_call.1} parent=1 // pred_check
      _
    $region55: #{tpu_custom_call.1} parent=1 // pred_check_branch
      %1964 = sbr.rel (0) target = $region57
    $region56: #{tpu_custom_call.1} parent=1 // pred_region
      %s1966 = ssub.s32 128, 128
      %1967 = vsyncadd [#allocation4], %s1966
      %s1969 = sshll.u32 [#allocation10], 4
      %s1970 = int_to_ptr.vmem [resolvable:$true] %s1969
      %1972 = dma.vmem_to_hbm [thread:$0]  %s1970, 128, %s9, [#allocation4]
    $region57: #{tpu_custom_call.1} parent=1 // pred_fallthru
      _
    // Predicated region
    $region58: #{tpu_custom_call.1} parent=1 // pred_check
      _
    $region59: #{tpu_custom_call.1} parent=1 // pred_check_branch
      %1974 = sbr.rel (0) target = $region61
    $region60: #{tpu_custom_call.1} parent=1 // pred_region
      %s1976 = ssub.s32 16, 16
      %1977 = vsyncadd [#allocation12], %s1976
      %s1979 = sshll.u32 [#allocation11], 4
      %s1980 = int_to_ptr.vmem [resolvable:$true] %s1979
      %1982 = dma.vmem_to_hbm [thread:$0]  %s1980, 16, %s10, [#allocation12]
    $region61: #{tpu_custom_call.1} parent=1 // pred_fallthru
      _
    // Predicated region
    $region62: #{tpu_custom_call.1} parent=1 // pred_check
      _
    $region63: #{tpu_custom_call.1} parent=1 // pred_check_branch
      %1984 = sbr.rel (0) target = $region65
    $region64: #{tpu_custom_call.1} parent=1 // pred_region
      %1985 = dma.done [#allocation4], 128
    $region65: #{tpu_custom_call.1} parent=1 // pred_fallthru
      _
    // Predicated region
    $region66: #{tpu_custom_call.1} parent=1 // pred_check
      _
    $region67: #{tpu_custom_call.1} parent=1 // pred_check_branch
      %1987 = sbr.rel (0) target = $region69
    $region68: #{tpu_custom_call.1} parent=1 // pred_region
      %1988 = dma.done [#allocation12], 16
    $region69: #{tpu_custom_call.1} parent=1 // pred_fallthru
      _
    %1989 = vsyncpa [#allocation3], 1
    %1990 = vsyncpa [#allocation6], 1
    %1991 = vsyncpa [#allocation9], 1
    %1992 = vsyncpa [#allocation4], 1
    %1993 = vsyncpa [#allocation12], 1

</llo_original>
